<compile_context>
chip_gen: v6e
topology: v6e:2x2x1
jax: 0.10.0
libtpu: 0.0.40
codegen_flags: <defaults>
</compile_context>

<pallas_src>
import functools

import jax
import jax.numpy as jnp
from jax.experimental import pallas as pl
from jax.experimental.pallas import tpu as pltpu

LN_EPS = 1e-5


def _round_up(n, m):
    return ((n + m - 1) // m) * m


def _batch_map(i):
    return (i, 0)


def _resident_map(i):
    return (0, 0)


# --------------------------------------------------------------------------
# Kernel
# --------------------------------------------------------------------------
def actor_kernel(x_ref,
                 w1_ref, b1_ref, g1_ref, be1_ref,
                 w2_ref, b2_ref, g2_ref, be2_ref,
                 wmu_ref, bmu_ref,
                 out_ref, *, hidden):
    """Fused linear1 -> LN -> ReLU -> linear2 -> LN -> ReLU -> mu -> tanh."""
    h_pad = g1_ref.shape[-1]
    inv_n = 1.0 / hidden                       # TRUE hidden size, not padded

    if hidden == h_pad:
        mask = None
    else:
        # Pad lanes of the activations are exactly 0 (zero-padded W columns /
        # biases); only the centered term needs masking.
        mask = (jax.lax.broadcasted_iota(jnp.int32, (1, h_pad), 1) < hidden
                ).astype(jnp.float32)

    def layer_norm_relu(h, gamma, beta):
        # Two-pass (centered) variance: robust against cancellation.
        mean = jnp.sum(h, axis=-1, keepdims=True) * inv_n
        d = h - mean
        if mask is not None:
            d = d * mask                       # pad lanes: (0 - mean) -> 0
        var = jnp.sum(d * d, axis=-1, keepdims=True) * inv_n
        hn = d * jax.lax.rsqrt(var + LN_EPS) * gamma + beta
        return jnp.maximum(hn, 0.0)            # gamma/beta pads are 0 -> ReLU keeps pads at 0

    # ---- linear1 (bf16 MXU operands, f32 accumulate) ----
    x = x_ref[...].astype(jnp.bfloat16)
    h = jnp.dot(x, w1_ref[...], preferred_element_type=jnp.float32) + b1_ref[...]
    h = layer_norm_relu(h, g1_ref[...], be1_ref[...])

    # ---- linear2 ----
    h = jnp.dot(h.astype(jnp.bfloat16), w2_ref[...],
                preferred_element_type=jnp.float32) + b2_ref[...]
    h = layer_norm_relu(h, g2_ref[...], be2_ref[...])

    # ---- mu head: tanh(h @ Wmu + bmu) (lane-padded to a multiple of 128) ----
    mu = jnp.dot(h.astype(jnp.bfloat16), wmu_ref[...],
                 preferred_element_type=jnp.float32) + bmu_ref[...]
    out_ref[...] = jnp.tanh(mu).astype(out_ref.dtype)


# --------------------------------------------------------------------------
# One-time weight preparation (hoisted out of the per-call hot path)
# --------------------------------------------------------------------------
def prepare_params(params):
    """Cast/pad weights ONCE. Returns the prepared operand tuple + metadata."""
    num_inputs, hidden = params["w1"].shape
    num_outputs = params["wmu"].shape[1]

    lane = 256 if hidden >= 256 else 128       # v6e/v7x MXU is 2x256^2
    h_pad = _round_up(hidden, lane)
    n_pad = _round_up(num_outputs, 128)

    def pad_cols(a, n, dtype):
        out = jnp.zeros((a.shape[0], n), dtype)
        return out.at[:, :a.shape[1]].set(a.astype(dtype))

    w1 = pad_cols(params["w1"], h_pad, jnp.bfloat16)          # (in, h_pad)
    b1 = pad_cols(params["b1"], h_pad, jnp.float32)
    g1 = pad_cols(params["g1"], h_pad, jnp.float32)           # pad gammas = 0
    be1 = pad_cols(params["be1"], h_pad, jnp.float32)

    w2 = jnp.zeros((h_pad, h_pad), jnp.bfloat16)
    w2 = w2.at[:hidden, :hidden].set(params["w2"].astype(jnp.bfloat16))
    b2 = pad_cols(params["b2"], h_pad, jnp.float32)
    g2 = pad_cols(params["g2"], h_pad, jnp.float32)
    be2 = pad_cols(params["be2"], h_pad, jnp.float32)

    wmu = jnp.zeros((h_pad, n_pad), jnp.bfloat16)
    wmu = wmu.at[:hidden, :num_outputs].set(params["wmu"].astype(jnp.bfloat16))
    bmu = pad_cols(params["bmu"], n_pad, jnp.float32)

    args = (w1, b1, g1, be1, w2, b2, g2, be2, wmu, bmu)
    return {
        "args": tuple(jax.block_until_ready(a) for a in args),
        "num_inputs": num_inputs,
        "hidden": hidden,
        "num_outputs": num_outputs,
        "h_pad": h_pad,
        "n_pad": n_pad,
    }


def _choose_tile_b(batch, tile_b_cap):
    b8 = _round_up(batch, 8)
    if b8 <= 64:
        # Tiny batch: single grid step; per-step pipeline overhead would dominate.
        return b8
    # Otherwise ensure >= 2 grid steps so the "parallel" batch axis can shard
    # across both TensorCores on v7x.
    half = _round_up((batch + 1) // 2, 8)
    return max(8, min(tile_b_cap, half))


# --------------------------------------------------------------------------
# Forward wrapper
# --------------------------------------------------------------------------
def actor_forward(x, prepped, *, tile_b_cap=512, weight_buffers="auto"):
    """x: (B, num_inputs) float32 -> mu: (B, num_outputs) float32."""
    B, num_inputs = x.shape
    assert num_inputs == prepped["num_inputs"]
    hidden = prepped["hidden"]
    h_pad = prepped["h_pad"]
    n_pad = prepped["n_pad"]
    num_outputs = prepped["num_outputs"]
    resident = prepped["args"]

    tile_b = _choose_tile_b(B, tile_b_cap)
    b_pad = _round_up(B, tile_b)
    x = x.astype(jnp.float32)
    if b_pad != B:
        x = jnp.pad(x, ((0, b_pad - B), (0, 0)))
    grid = (b_pad // tile_b,)

    weight_bytes = sum(int(a.size) * a.dtype.itemsize for a in resident)
    cost = pl.CostEstimate(
        flops=2 * b_pad * (num_inputs * h_pad + h_pad * h_pad + h_pad * n_pad),
        transcendentals=b_pad * (n_pad + 2),          # tanh + 2x rsqrt per row
        bytes_accessed=int(x.nbytes) + weight_bytes + b_pad * n_pad * 4,
    )

    kernel = functools.partial(actor_kernel, hidden=hidden)

    def run(wbuf):
        nbuf = 2 if wbuf is None else wbuf
        in_specs = [pl.BlockSpec((tile_b, num_inputs), _batch_map)]
        for a in resident:
            if wbuf is None:
                in_specs.append(pl.BlockSpec(a.shape, _resident_map))
            else:
                # Constant index_map -> a single VMEM buffer is enough.
                in_specs.append(pl.BlockSpec(a.shape, _resident_map,
                                             pipeline_mode=pl.Buffered(wbuf)))
        vmem_need = (nbuf * weight_bytes
                     + 2 * tile_b * (num_inputs + n_pad) * 4   # x / out double-buffers
                     + 6 * tile_b * h_pad * 4)                 # activation temporaries
        vmem_limit = int(min(max(vmem_need, 32 * 1024 * 1024), 64 * 1024 * 1024))
        return pl.pallas_call(
            kernel,
            out_shape=jax.ShapeDtypeStruct((b_pad, n_pad), jnp.float32),
            grid=grid,
            in_specs=in_specs,
            out_specs=pl.BlockSpec((tile_b, n_pad), _batch_map),
            compiler_params=pltpu.CompilerParams(
                dimension_semantics=("parallel",),
                vmem_limit_bytes=vmem_limit),
            cost_estimate=cost,
        )(x, *resident)

    if weight_buffers == "auto":
        # Single-buffer the resident weights; fall back to default
        # double-buffering on jax versions where pipeline_mode isn't supported
        # for pallas_call BlockSpecs. (Pin weight_buffers=1/None under jit.)
        try:
            out = run(1)
        except Exception:
            out = run(None)
    else:
        out = run(weight_buffers)

    return out[:B, :num_outputs]


# --------------------------------------------------------------------------
# Init + references
# --------------------------------------------------------------------------
def init_actor_params(key, num_inputs, hidden_size, num_outputs):
    """Deterministic init mirroring nn.Linear defaults + the 0.1 mu scaling."""
    ks = jax.random.split(key, 6)

    def linear_init(kw, kb, fan_in, fan_out):
        bound = 1.0 / jnp.sqrt(fan_in)
        # stored as (in, out) — transpose of PyTorch's (out, in)
        w = jax.random.uniform(kw, (fan_in, fan_out), jnp.float32, -bound, bound)
        b = jax.random.uniform(kb, (1, fan_out), jnp.float32, -bound, bound)
        return w, b

    w1, b1 = linear_init(ks[0], ks[1], num_inputs, hidden_size)
    w2, b2 = linear_init(ks[2], ks[3], hidden_size, hidden_size)
    wmu, bmu = linear_init(ks[4], ks[5], hidden_size, num_outputs)
    wmu = wmu * 0.1   # self.mu.weight.data.mul_(0.1)
    bmu = bmu * 0.1   # self.mu.bias.data.mul_(0.1)

    g1 = jnp.ones((1, hidden_size), jnp.float32)
    be1 = jnp.zeros((1, hidden_size), jnp.float32)
    g2 = jnp.ones((1, hidden_size), jnp.float32)
    be2 = jnp.zeros((1, hidden_size), jnp.float32)

    return {
        "w1": w1, "b1": b1, "g1": g1, "be1": be1,
        "w2": w2, "b2": b2, "g2": g2, "be2": be2,
        "wmu": wmu, "bmu": bmu,
    }


def actor_reference_f32(x, p):
    """Pure-JAX f32 reference matching the PyTorch module exactly."""
    h = x @ p["w1"] + p["b1"]
    h = (h - h.mean(-1, keepdims=True)) * jax.lax.rsqrt(
        h.var(-1, keepdims=True) + LN_EPS)
    h = jnp.maximum(h * p["g1"] + p["be1"], 0.0)
    h = h @ p["w2"] + p["b2"]
    h = (h - h.mean(-1, keepdims=True)) * jax.lax.rsqrt(
        h.var(-1, keepdims=True) + LN_EPS)
    h = jnp.maximum(h * p["g2"] + p["be2"], 0.0)
    return jnp.tanh(h @ p["wmu"] + p["bmu"])


def actor_reference_bf16(x, p):
    """Pure-JAX reference mirroring the kernel's bf16-operand matmuls."""
    def mm(a, w):
        return jnp.dot(a.astype(jnp.bfloat16), w.astype(jnp.bfloat16),
                       preferred_element_type=jnp.float32)
    h = mm(x, p["w1"]) + p["b1"]
    h = (h - h.mean(-1, keepdims=True)) * jax.lax.rsqrt(
        h.var(-1, keepdims=True) + LN_EPS)
    h = jnp.maximum(h * p["g1"] + p["be1"], 0.0)
    h = mm(h, p["w2"]) + p["b2"]
    h = (h - h.mean(-1, keepdims=True)) * jax.lax.rsqrt(
        h.var(-1, keepdims=True) + LN_EPS)
    h = jnp.maximum(h * p["g2"] + p["be2"], 0.0)
    return jnp.tanh(mm(h, p["wmu"]) + p["bmu"])


if __name__ == "__main__":
    # Small shapes consistent with Actor(hidden_size, num_inputs, action_space)
    batch = 8
    num_inputs = 16
    hidden_size = 32
    num_outputs = 4   # action_space.shape[0]

    key = jax.random.PRNGKey(0)
    k_x, k_p, k_x2 = jax.random.split(key, 3)

    x = jax.random.normal(k_x, (batch, num_inputs), jnp.float32)
    params = init_actor_params(k_p, num_inputs, hidden_size, num_outputs)
    prepped = prepare_params(params)          # one-time weight prep

    mu = jax.block_until_ready(actor_forward(x, prepped))
    assert mu.shape == (batch, num_outputs)

    # Tight check vs. a bf16-matched reference, loose check vs. the f32 spec.
    ref_bf16 = actor_reference_bf16(x, params)
    ref_f32 = actor_reference_f32(x, params)
    assert jnp.allclose(mu, ref_bf16, atol=2e-3, rtol=2e-3)
    assert jnp.allclose(mu, ref_f32, atol=3e-2, rtol=3e-2)

    # Exercise the multi-step grid (>= 2 steps, engages both TCs on v7x) and
    # the batch-padding path with a training-sized batch.
    x2 = jax.random.normal(k_x2, (200, num_inputs), jnp.float32)
    mu2 = jax.block_until_ready(actor_forward(x2, prepped))
    assert mu2.shape == (200, num_outputs)
    assert jnp.allclose(mu2, actor_reference_bf16(x2, params), atol=2e-3, rtol=2e-3)
    assert jnp.allclose(mu2, actor_reference_f32(x2, params), atol=3e-2, rtol=3e-2)

    print("KERNEL_OK")
</pallas_src>

<mosaic_0001>
module attributes {stable_mosaic.version = 11 : i64} {
  func.func @actor_kernel(%arg0: i32, %arg1: memref<8x16xf32, #tpu.memory_space<vmem>>, %arg2: memref<16x128xbf16, #tpu.memory_space<vmem>>, %arg3: memref<1x128xf32, #tpu.memory_space<vmem>>, %arg4: memref<1x128xf32, #tpu.memory_space<vmem>>, %arg5: memref<1x128xf32, #tpu.memory_space<vmem>>, %arg6: memref<128x128xbf16, #tpu.memory_space<vmem>>, %arg7: memref<1x128xf32, #tpu.memory_space<vmem>>, %arg8: memref<1x128xf32, #tpu.memory_space<vmem>>, %arg9: memref<1x128xf32, #tpu.memory_space<vmem>>, %arg10: memref<128x128xbf16, #tpu.memory_space<vmem>>, %arg11: memref<1x128xf32, #tpu.memory_space<vmem>>, %arg12: memref<8x128xf32, #tpu.memory_space<vmem>>) attributes {dimension_semantics = [#tpu.dimension_semantics<parallel>], iteration_bounds = array<i64: 1>, scalar_prefetch = 0 : i64, scratch_operands = 0 : i64, tpu.core_type = #tpu.core_type<tc>, window_params = [{transform_indices = @transform_0, window_bounds = array<i64: 8, 16>}, {pipeline_mode = #tpu.pipeline_mode<synchronous>, transform_indices = @transform_1, window_bounds = array<i64: 16, 128>}, {pipeline_mode = #tpu.pipeline_mode<synchronous>, transform_indices = @transform_2, window_bounds = array<i64: 1, 128>}, {pipeline_mode = #tpu.pipeline_mode<synchronous>, transform_indices = @transform_3, window_bounds = array<i64: 1, 128>}, {pipeline_mode = #tpu.pipeline_mode<synchronous>, transform_indices = @transform_4, window_bounds = array<i64: 1, 128>}, {pipeline_mode = #tpu.pipeline_mode<synchronous>, transform_indices = @transform_5, window_bounds = array<i64: 128, 128>}, {pipeline_mode = #tpu.pipeline_mode<synchronous>, transform_indices = @transform_6, window_bounds = array<i64: 1, 128>}, {pipeline_mode = #tpu.pipeline_mode<synchronous>, transform_indices = @transform_7, window_bounds = array<i64: 1, 128>}, {pipeline_mode = #tpu.pipeline_mode<synchronous>, transform_indices = @transform_8, window_bounds = array<i64: 1, 128>}, {pipeline_mode = #tpu.pipeline_mode<synchronous>, transform_indices = @transform_9, window_bounds = array<i64: 128, 128>}, {pipeline_mode = #tpu.pipeline_mode<synchronous>, transform_indices = @transform_10, window_bounds = array<i64: 1, 128>}, {transform_indices = @transform_11, window_bounds = array<i64: 8, 128>}]} {
    %0 = tpu.iota {dimensions = array<i32: 1>} : vector<1x128xi32>
    %c32_i32 = arith.constant 32 : i32
    %1 = vector.broadcast %c32_i32 : i32 to vector<1x128xi32>
    %2 = arith.cmpi slt, %0, %1 : vector<1x128xi32>
    %3 = arith.extui %2 : vector<1x128xi1> to vector<1x128xi32>
    %4 = arith.sitofp %3 : vector<1x128xi32> to vector<1x128xf32>
    %c0 = arith.constant 0 : index
    %c0_0 = arith.constant 0 : index
    %5 = vector.load %arg1[%c0, %c0_0] : memref<8x16xf32, #tpu.memory_space<vmem>>, vector<8x16xf32>
    %6 = arith.truncf %5 : vector<8x16xf32> to vector<8x16xbf16>
    %c0_1 = arith.constant 0 : index
    %c0_2 = arith.constant 0 : index
    %7 = vector.load %arg2[%c0_1, %c0_2] : memref<16x128xbf16, #tpu.memory_space<vmem>>, vector<16x128xbf16>
    %cst = arith.constant dense<0.000000e+00> : vector<8x128xf32>
    %8 = tpu.matmul %6, %7, %cst {dimension_numbers = #tpu.dot_dimension_numbers<[1], [0], [0], [1], [0, 0, 1, 1], [], []>} : vector<8x16xbf16>, vector<16x128xbf16>, vector<8x128xf32> -> vector<8x128xf32>
    %c0_3 = arith.constant 0 : index
    %c0_4 = arith.constant 0 : index
    %9 = vector.load %arg3[%c0_3, %c0_4] : memref<1x128xf32, #tpu.memory_space<vmem>>, vector<1x128xf32>
    %10 = vector.broadcast %9 : vector<1x128xf32> to vector<8x128xf32>
    %11 = arith.addf %8, %10 : vector<8x128xf32>
    %c0_5 = arith.constant 0 : index
    %c0_6 = arith.constant 0 : index
    %12 = vector.load %arg4[%c0_5, %c0_6] : memref<1x128xf32, #tpu.memory_space<vmem>>, vector<1x128xf32>
    %c0_7 = arith.constant 0 : index
    %c0_8 = arith.constant 0 : index
    %13 = vector.load %arg5[%c0_7, %c0_8] : memref<1x128xf32, #tpu.memory_space<vmem>>, vector<1x128xf32>
    %cst_9 = arith.constant dense<0.000000e+00> : vector<8xf32>
    %14 = vector.multi_reduction <add>, %11, %cst_9 [1] : vector<8x128xf32> to vector<8xf32>
    %15 = vector.shape_cast %14 : vector<8xf32> to vector<8x1xf32>
    %cst_10 = arith.constant 3.125000e-02 : f32
    %16 = vector.broadcast %cst_10 : f32 to vector<8x1xf32>
    %17 = arith.mulf %15, %16 : vector<8x1xf32>
    %18 = vector.broadcast %17 : vector<8x1xf32> to vector<8x128xf32>
    %19 = arith.subf %11, %18 : vector<8x128xf32>
    %20 = vector.broadcast %4 : vector<1x128xf32> to vector<8x128xf32>
    %21 = arith.mulf %19, %20 : vector<8x128xf32>
    %22 = arith.mulf %21, %21 : vector<8x128xf32>
    %cst_11 = arith.constant dense<0.000000e+00> : vector<8xf32>
    %23 = vector.multi_reduction <add>, %22, %cst_11 [1] : vector<8x128xf32> to vector<8xf32>
    %24 = vector.shape_cast %23 : vector<8xf32> to vector<8x1xf32>
    %cst_12 = arith.constant 3.125000e-02 : f32
    %25 = vector.broadcast %cst_12 : f32 to vector<8x1xf32>
    %26 = arith.mulf %24, %25 : vector<8x1xf32>
    %cst_13 = arith.constant 9.99999974E-6 : f32
    %27 = vector.broadcast %cst_13 : f32 to vector<8x1xf32>
    %28 = arith.addf %26, %27 : vector<8x1xf32>
    %29 = math.rsqrt %28 : vector<8x1xf32>
    %30 = vector.broadcast %29 : vector<8x1xf32> to vector<8x128xf32>
    %31 = arith.mulf %21, %30 : vector<8x128xf32>
    %32 = vector.broadcast %12 : vector<1x128xf32> to vector<8x128xf32>
    %33 = arith.mulf %31, %32 : vector<8x128xf32>
    %34 = vector.broadcast %13 : vector<1x128xf32> to vector<8x128xf32>
    %35 = arith.addf %33, %34 : vector<8x128xf32>
    %cst_14 = arith.constant 0.000000e+00 : f32
    %36 = vector.broadcast %cst_14 : f32 to vector<8x128xf32>
    %37 = arith.maximumf %35, %36 : vector<8x128xf32>
    %38 = arith.truncf %37 : vector<8x128xf32> to vector<8x128xbf16>
    %c0_15 = arith.constant 0 : index
    %c0_16 = arith.constant 0 : index
    %39 = vector.load %arg6[%c0_15, %c0_16] : memref<128x128xbf16, #tpu.memory_space<vmem>>, vector<128x128xbf16>
    %cst_17 = arith.constant dense<0.000000e+00> : vector<8x128xf32>
    %40 = tpu.matmul %38, %39, %cst_17 {dimension_numbers = #tpu.dot_dimension_numbers<[1], [0], [0], [1], [0, 0, 1, 1], [], []>} : vector<8x128xbf16>, vector<128x128xbf16>, vector<8x128xf32> -> vector<8x128xf32>
    %c0_18 = arith.constant 0 : index
    %c0_19 = arith.constant 0 : index
    %41 = vector.load %arg7[%c0_18, %c0_19] : memref<1x128xf32, #tpu.memory_space<vmem>>, vector<1x128xf32>
    %42 = vector.broadcast %41 : vector<1x128xf32> to vector<8x128xf32>
    %43 = arith.addf %40, %42 : vector<8x128xf32>
    %c0_20 = arith.constant 0 : index
    %c0_21 = arith.constant 0 : index
    %44 = vector.load %arg8[%c0_20, %c0_21] : memref<1x128xf32, #tpu.memory_space<vmem>>, vector<1x128xf32>
    %c0_22 = arith.constant 0 : index
    %c0_23 = arith.constant 0 : index
    %45 = vector.load %arg9[%c0_22, %c0_23] : memref<1x128xf32, #tpu.memory_space<vmem>>, vector<1x128xf32>
    %cst_24 = arith.constant dense<0.000000e+00> : vector<8xf32>
    %46 = vector.multi_reduction <add>, %43, %cst_24 [1] : vector<8x128xf32> to vector<8xf32>
    %47 = vector.shape_cast %46 : vector<8xf32> to vector<8x1xf32>
    %cst_25 = arith.constant 3.125000e-02 : f32
    %48 = vector.broadcast %cst_25 : f32 to vector<8x1xf32>
    %49 = arith.mulf %47, %48 : vector<8x1xf32>
    %50 = vector.broadcast %49 : vector<8x1xf32> to vector<8x128xf32>
    %51 = arith.subf %43, %50 : vector<8x128xf32>
    %52 = vector.broadcast %4 : vector<1x128xf32> to vector<8x128xf32>
    %53 = arith.mulf %51, %52 : vector<8x128xf32>
    %54 = arith.mulf %53, %53 : vector<8x128xf32>
    %cst_26 = arith.constant dense<0.000000e+00> : vector<8xf32>
    %55 = vector.multi_reduction <add>, %54, %cst_26 [1] : vector<8x128xf32> to vector<8xf32>
    %56 = vector.shape_cast %55 : vector<8xf32> to vector<8x1xf32>
    %cst_27 = arith.constant 3.125000e-02 : f32
    %57 = vector.broadcast %cst_27 : f32 to vector<8x1xf32>
    %58 = arith.mulf %56, %57 : vector<8x1xf32>
    %cst_28 = arith.constant 9.99999974E-6 : f32
    %59 = vector.broadcast %cst_28 : f32 to vector<8x1xf32>
    %60 = arith.addf %58, %59 : vector<8x1xf32>
    %61 = math.rsqrt %60 : vector<8x1xf32>
    %62 = vector.broadcast %61 : vector<8x1xf32> to vector<8x128xf32>
    %63 = arith.mulf %53, %62 : vector<8x128xf32>
    %64 = vector.broadcast %44 : vector<1x128xf32> to vector<8x128xf32>
    %65 = arith.mulf %63, %64 : vector<8x128xf32>
    %66 = vector.broadcast %45 : vector<1x128xf32> to vector<8x128xf32>
    %67 = arith.addf %65, %66 : vector<8x128xf32>
    %cst_29 = arith.constant 0.000000e+00 : f32
    %68 = vector.broadcast %cst_29 : f32 to vector<8x128xf32>
    %69 = arith.maximumf %67, %68 : vector<8x128xf32>
    %70 = arith.truncf %69 : vector<8x128xf32> to vector<8x128xbf16>
    %c0_30 = arith.constant 0 : index
    %c0_31 = arith.constant 0 : index
    %71 = vector.load %arg10[%c0_30, %c0_31] : memref<128x128xbf16, #tpu.memory_space<vmem>>, vector<128x128xbf16>
    %cst_32 = arith.constant dense<0.000000e+00> : vector<8x128xf32>
    %72 = tpu.matmul %70, %71, %cst_32 {dimension_numbers = #tpu.dot_dimension_numbers<[1], [0], [0], [1], [0, 0, 1, 1], [], []>} : vector<8x128xbf16>, vector<128x128xbf16>, vector<8x128xf32> -> vector<8x128xf32>
    %c0_33 = arith.constant 0 : index
    %c0_34 = arith.constant 0 : index
    %73 = vector.load %arg11[%c0_33, %c0_34] : memref<1x128xf32, #tpu.memory_space<vmem>>, vector<1x128xf32>
    %74 = vector.broadcast %73 : vector<1x128xf32> to vector<8x128xf32>
    %75 = arith.addf %72, %74 : vector<8x128xf32>
    %76 = math.tanh %75 : vector<8x128xf32>
    %c0_35 = arith.constant 0 : index
    %c0_36 = arith.constant 0 : index
    %77 = vector.load %arg12[%c0_35, %c0_36] : memref<8x128xf32, #tpu.memory_space<vmem>>, vector<8x128xf32>
    tpu.vector_store %arg12[%c0_35, %c0_36], %76 {strides = array<i32>} : memref<8x128xf32, #tpu.memory_space<vmem>>, vector<8x128xf32>,
    return
  }
  func.func @transform_0(%arg0: i32) -> (i32, i32) {
    %c0_i32 = arith.constant 0 : i32
    %c0_i32_0 = arith.constant 0 : i32
    return %arg0, %c0_i32 : i32, i32
  }
  func.func @transform_1(%arg0: i32) -> (i32, i32) {
    %c0_i32 = arith.constant 0 : i32
    %c0_i32_0 = arith.constant 0 : i32
    %c0_i32_1 = arith.constant 0 : i32
    return %c0_i32, %c0_i32_0 : i32, i32
  }
  func.func @transform_2(%arg0: i32) -> (i32, i32) {
    %c0_i32 = arith.constant 0 : i32
    %c0_i32_0 = arith.constant 0 : i32
    %c0_i32_1 = arith.constant 0 : i32
    return %c0_i32, %c0_i32_0 : i32, i32
  }
  func.func @transform_3(%arg0: i32) -> (i32, i32) {
    %c0_i32 = arith.constant 0 : i32
    %c0_i32_0 = arith.constant 0 : i32
    %c0_i32_1 = arith.constant 0 : i32
    return %c0_i32, %c0_i32_0 : i32, i32
  }
  func.func @transform_4(%arg0: i32) -> (i32, i32) {
    %c0_i32 = arith.constant 0 : i32
    %c0_i32_0 = arith.constant 0 : i32
    %c0_i32_1 = arith.constant 0 : i32
    return %c0_i32, %c0_i32_0 : i32, i32
  }
  func.func @transform_5(%arg0: i32) -> (i32, i32) {
    %c0_i32 = arith.constant 0 : i32
    %c0_i32_0 = arith.constant 0 : i32
    %c0_i32_1 = arith.constant 0 : i32
    return %c0_i32, %c0_i32_0 : i32, i32
  }
  func.func @transform_6(%arg0: i32) -> (i32, i32) {
    %c0_i32 = arith.constant 0 : i32
    %c0_i32_0 = arith.constant 0 : i32
    %c0_i32_1 = arith.constant 0 : i32
    return %c0_i32, %c0_i32_0 : i32, i32
  }
  func.func @transform_7(%arg0: i32) -> (i32, i32) {
    %c0_i32 = arith.constant 0 : i32
    %c0_i32_0 = arith.constant 0 : i32
    %c0_i32_1 = arith.constant 0 : i32
    return %c0_i32, %c0_i32_0 : i32, i32
  }
  func.func @transform_8(%arg0: i32) -> (i32, i32) {
    %c0_i32 = arith.constant 0 : i32
    %c0_i32_0 = arith.constant 0 : i32
    %c0_i32_1 = arith.constant 0 : i32
    return %c0_i32, %c0_i32_0 : i32, i32
  }
  func.func @transform_9(%arg0: i32) -> (i32, i32) {
    %c0_i32 = arith.constant 0 : i32
    %c0_i32_0 = arith.constant 0 : i32
    %c0_i32_1 = arith.constant 0 : i32
    return %c0_i32, %c0_i32_0 : i32, i32
  }
  func.func @transform_10(%arg0: i32) -> (i32, i32) {
    %c0_i32 = arith.constant 0 : i32
    %c0_i32_0 = arith.constant 0 : i32
    %c0_i32_1 = arith.constant 0 : i32
    return %c0_i32, %c0_i32_0 : i32, i32
  }
  func.func @transform_11(%arg0: i32) -> (i32, i32) {
    %c0_i32 = arith.constant 0 : i32
    %c0_i32_0 = arith.constant 0 : i32
    return %arg0, %c0_i32 : i32, i32
  }
}

module attributes {stable_mosaic.version = 11 : i64} {
  func.func @actor_kernel(%arg0: i32, %arg1: memref<8x16xf32, #tpu.memory_space<vmem>>, %arg2: memref<16x128xbf16, #tpu.memory_space<vmem>>, %arg3: memref<1x128xf32, #tpu.memory_space<vmem>>, %arg4: memref<1x128xf32, #tpu.memory_space<vmem>>, %arg5: memref<1x128xf32, #tpu.memory_space<vmem>>, %arg6: memref<128x128xbf16, #tpu.memory_space<vmem>>, %arg7: memref<1x128xf32, #tpu.memory_space<vmem>>, %arg8: memref<1x128xf32, #tpu.memory_space<vmem>>, %arg9: memref<1x128xf32, #tpu.memory_space<vmem>>, %arg10: memref<128x128xbf16, #tpu.memory_space<vmem>>, %arg11: memref<1x128xf32, #tpu.memory_space<vmem>>, %arg12: memref<8x128xf32, #tpu.memory_space<vmem>>) attributes {dimension_semantics = [#tpu.dimension_semantics<parallel>], iteration_bounds = array<i64: 1>, scalar_prefetch = 0 : i64, scratch_operands = 0 : i64, tpu.core_type = #tpu.core_type<tc>, window_params = [{transform_indices = @transform_0, window_bounds = array<i64: 8, 16>}, {pipeline_mode = #tpu.pipeline_mode<synchronous>, transform_indices = @transform_1, window_bounds = array<i64: 16, 128>}, {pipeline_mode = #tpu.pipeline_mode<synchronous>, transform_indices = @transform_2, window_bounds = array<i64: 1, 128>}, {pipeline_mode = #tpu.pipeline_mode<synchronous>, transform_indices = @transform_3, window_bounds = array<i64: 1, 128>}, {pipeline_mode = #tpu.pipeline_mode<synchronous>, transform_indices = @transform_4, window_bounds = array<i64: 1, 128>}, {pipeline_mode = #tpu.pipeline_mode<synchronous>, transform_indices = @transform_5, window_bounds = array<i64: 128, 128>}, {pipeline_mode = #tpu.pipeline_mode<synchronous>, transform_indices = @transform_6, window_bounds = array<i64: 1, 128>}, {pipeline_mode = #tpu.pipeline_mode<synchronous>, transform_indices = @transform_7, window_bounds = array<i64: 1, 128>}, {pipeline_mode = #tpu.pipeline_mode<synchronous>, transform_indices = @transform_8, window_bounds = array<i64: 1, 128>}, {pipeline_mode = #tpu.pipeline_mode<synchronous>, transform_indices = @transform_9, window_bounds = array<i64: 128, 128>}, {pipeline_mode = #tpu.pipeline_mode<synchronous>, transform_indices = @transform_10, window_bounds = array<i64: 1, 128>}, {transform_indices = @transform_11, window_bounds = array<i64: 8, 128>}]} {
    %0 = tpu.iota {dimensions = array<i32: 1>} : vector<1x128xi32>
    %c32_i32 = arith.constant 32 : i32
    %1 = vector.broadcast %c32_i32 : i32 to vector<1x128xi32>
    %2 = arith.cmpi slt, %0, %1 : vector<1x128xi32>
    %3 = arith.extui %2 : vector<1x128xi1> to vector<1x128xi32>
    %4 = arith.sitofp %3 : vector<1x128xi32> to vector<1x128xf32>
    %c0 = arith.constant 0 : index
    %c0_0 = arith.constant 0 : index
    %5 = vector.load %arg1[%c0, %c0_0] : memref<8x16xf32, #tpu.memory_space<vmem>>, vector<8x16xf32>
    %6 = arith.truncf %5 : vector<8x16xf32> to vector<8x16xbf16>
    %c0_1 = arith.constant 0 : index
    %c0_2 = arith.constant 0 : index
    %7 = vector.load %arg2[%c0_1, %c0_2] : memref<16x128xbf16, #tpu.memory_space<vmem>>, vector<16x128xbf16>
    %cst = arith.constant dense<0.000000e+00> : vector<8x128xf32>
    %8 = tpu.matmul %6, %7, %cst {dimension_numbers = #tpu.dot_dimension_numbers<[1], [0], [0], [1], [0, 0, 1, 1], [], []>} : vector<8x16xbf16>, vector<16x128xbf16>, vector<8x128xf32> -> vector<8x128xf32>
    %c0_3 = arith.constant 0 : index
    %c0_4 = arith.constant 0 : index
    %9 = vector.load %arg3[%c0_3, %c0_4] : memref<1x128xf32, #tpu.memory_space<vmem>>, vector<1x128xf32>
    %10 = vector.broadcast %9 : vector<1x128xf32> to vector<8x128xf32>
    %11 = arith.addf %8, %10 : vector<8x128xf32>
    %c0_5 = arith.constant 0 : index
    %c0_6 = arith.constant 0 : index
    %12 = vector.load %arg4[%c0_5, %c0_6] : memref<1x128xf32, #tpu.memory_space<vmem>>, vector<1x128xf32>
    %c0_7 = arith.constant 0 : index
    %c0_8 = arith.constant 0 : index
    %13 = vector.load %arg5[%c0_7, %c0_8] : memref<1x128xf32, #tpu.memory_space<vmem>>, vector<1x128xf32>
    %cst_9 = arith.constant dense<0.000000e+00> : vector<8xf32>
    %14 = vector.multi_reduction <add>, %11, %cst_9 [1] : vector<8x128xf32> to vector<8xf32>
    %15 = vector.shape_cast %14 : vector<8xf32> to vector<8x1xf32>
    %cst_10 = arith.constant 3.125000e-02 : f32
    %16 = vector.broadcast %cst_10 : f32 to vector<8x1xf32>
    %17 = arith.mulf %15, %16 : vector<8x1xf32>
    %18 = vector.broadcast %17 : vector<8x1xf32> to vector<8x128xf32>
    %19 = arith.subf %11, %18 : vector<8x128xf32>
    %20 = vector.broadcast %4 : vector<1x128xf32> to vector<8x128xf32>
    %21 = arith.mulf %19, %20 : vector<8x128xf32>
    %22 = arith.mulf %21, %21 : vector<8x128xf32>
    %cst_11 = arith.constant dense<0.000000e+00> : vector<8xf32>
    %23 = vector.multi_reduction <add>, %22, %cst_11 [1] : vector<8x128xf32> to vector<8xf32>
    %24 = vector.shape_cast %23 : vector<8xf32> to vector<8x1xf32>
    %cst_12 = arith.constant 3.125000e-02 : f32
    %25 = vector.broadcast %cst_12 : f32 to vector<8x1xf32>
    %26 = arith.mulf %24, %25 : vector<8x1xf32>
    %cst_13 = arith.constant 9.99999974E-6 : f32
    %27 = vector.broadcast %cst_13 : f32 to vector<8x1xf32>
    %28 = arith.addf %26, %27 : vector<8x1xf32>
    %29 = math.rsqrt %28 : vector<8x1xf32>
    %30 = vector.broadcast %29 : vector<8x1xf32> to vector<8x128xf32>
    %31 = arith.mulf %21, %30 : vector<8x128xf32>
    %32 = vector.broadcast %12 : vector<1x128xf32> to vector<8x128xf32>
    %33 = arith.mulf %31, %32 : vector<8x128xf32>
    %34 = vector.broadcast %13 : vector<1x128xf32> to vector<8x128xf32>
    %35 = arith.addf %33, %34 : vector<8x128xf32>
    %cst_14 = arith.constant 0.000000e+00 : f32
    %36 = vector.broadcast %cst_14 : f32 to vector<8x128xf32>
    %37 = arith.maximumf %35, %36 : vector<8x128xf32>
    %38 = arith.truncf %37 : vector<8x128xf32> to vector<8x128xbf16>
    %c0_15 = arith.constant 0 : index
    %c0_16 = arith.constant 0 : index
    %39 = vector.load %arg6[%c0_15, %c0_16] : memref<128x128xbf16, #tpu.memory_space<vmem>>, vector<128x128xbf16>
    %cst_17 = arith.constant dense<0.000000e+00> : vector<8x128xf32>
    %40 = tpu.matmul %38, %39, %cst_17 {dimension_numbers = #tpu.dot_dimension_numbers<[1], [0], [0], [1], [0, 0, 1, 1], [], []>} : vector<8x128xbf16>, vector<128x128xbf16>, vector<8x128xf32> -> vector<8x128xf32>
    %c0_18 = arith.constant 0 : index
    %c0_19 = arith.constant 0 : index
    %41 = vector.load %arg7[%c0_18, %c0_19] : memref<1x128xf32, #tpu.memory_space<vmem>>, vector<1x128xf32>
    %42 = vector.broadcast %41 : vector<1x128xf32> to vector<8x128xf32>
    %43 = arith.addf %40, %42 : vector<8x128xf32>
    %c0_20 = arith.constant 0 : index
    %c0_21 = arith.constant 0 : index
    %44 = vector.load %arg8[%c0_20, %c0_21] : memref<1x128xf32, #tpu.memory_space<vmem>>, vector<1x128xf32>
    %c0_22 = arith.constant 0 : index
    %c0_23 = arith.constant 0 : index
    %45 = vector.load %arg9[%c0_22, %c0_23] : memref<1x128xf32, #tpu.memory_space<vmem>>, vector<1x128xf32>
    %cst_24 = arith.constant dense<0.000000e+00> : vector<8xf32>
    %46 = vector.multi_reduction <add>, %43, %cst_24 [1] : vector<8x128xf32> to vector<8xf32>
    %47 = vector.shape_cast %46 : vector<8xf32> to vector<8x1xf32>
    %cst_25 = arith.constant 3.125000e-02 : f32
    %48 = vector.broadcast %cst_25 : f32 to vector<8x1xf32>
    %49 = arith.mulf %47, %48 : vector<8x1xf32>
    %50 = vector.broadcast %49 : vector<8x1xf32> to vector<8x128xf32>
    %51 = arith.subf %43, %50 : vector<8x128xf32>
    %52 = vector.broadcast %4 : vector<1x128xf32> to vector<8x128xf32>
    %53 = arith.mulf %51, %52 : vector<8x128xf32>
    %54 = arith.mulf %53, %53 : vector<8x128xf32>
    %cst_26 = arith.constant dense<0.000000e+00> : vector<8xf32>
    %55 = vector.multi_reduction <add>, %54, %cst_26 [1] : vector<8x128xf32> to vector<8xf32>
    %56 = vector.shape_cast %55 : vector<8xf32> to vector<8x1xf32>
    %cst_27 = arith.constant 3.125000e-02 : f32
    %57 = vector.broadcast %cst_27 : f32 to vector<8x1xf32>
    %58 = arith.mulf %56, %57 : vector<8x1xf32>
    %cst_28 = arith.constant 9.99999974E-6 : f32
    %59 = vector.broadcast %cst_28 : f32 to vector<8x1xf32>
    %60 = arith.addf %58, %59 : vector<8x1xf32>
    %61 = math.rsqrt %60 : vector<8x1xf32>
    %62 = vector.broadcast %61 : vector<8x1xf32> to vector<8x128xf32>
    %63 = arith.mulf %53, %62 : vector<8x128xf32>
    %64 = vector.broadcast %44 : vector<1x128xf32> to vector<8x128xf32>
    %65 = arith.mulf %63, %64 : vector<8x128xf32>
    %66 = vector.broadcast %45 : vector<1x128xf32> to vector<8x128xf32>
    %67 = arith.addf %65, %66 : vector<8x128xf32>
    %cst_29 = arith.constant 0.000000e+00 : f32
    %68 = vector.broadcast %cst_29 : f32 to vector<8x128xf32>
    %69 = arith.maximumf %67, %68 : vector<8x128xf32>
    %70 = arith.truncf %69 : vector<8x128xf32> to vector<8x128xbf16>
    %c0_30 = arith.constant 0 : index
    %c0_31 = arith.constant 0 : index
    %71 = vector.load %arg10[%c0_30, %c0_31] : memref<128x128xbf16, #tpu.memory_space<vmem>>, vector<128x128xbf16>
    %cst_32 = arith.constant dense<0.000000e+00> : vector<8x128xf32>
    %72 = tpu.matmul %70, %71, %cst_32 {dimension_numbers = #tpu.dot_dimension_numbers<[1], [0], [0], [1], [0, 0, 1, 1], [], []>} : vector<8x128xbf16>, vector<128x128xbf16>, vector<8x128xf32> -> vector<8x128xf32>
    %c0_33 = arith.constant 0 : index
    %c0_34 = arith.constant 0 : index
    %73 = vector.load %arg11[%c0_33, %c0_34] : memref<1x128xf32, #tpu.memory_space<vmem>>, vector<1x128xf32>
    %74 = vector.broadcast %73 : vector<1x128xf32> to vector<8x128xf32>
    %75 = arith.addf %72, %74 : vector<8x128xf32>
    %76 = math.tanh %75 : vector<8x128xf32>
    %c0_35 = arith.constant 0 : index
    %c0_36 = arith.constant 0 : index
    %77 = vector.load %arg12[%c0_35, %c0_36] : memref<8x128xf32, #tpu.memory_space<vmem>>, vector<8x128xf32>
    tpu.vector_store %arg12[%c0_35, %c0_36], %76 {strides = array<i32>} : memref<8x128xf32, #tpu.memory_space<vmem>>, vector<8x128xf32>,
    return
  }
  func.func @transform_0(%arg0: i32) -> (i32, i32) {
    %c0_i32 = arith.constant 0 : i32
    %c0_i32_0 = arith.constant 0 : i32
    return %arg0, %c0_i32 : i32, i32
  }
  func.func @transform_1(%arg0: i32) -> (i32, i32) {
    %c0_i32 = arith.constant 0 : i32
    %c0_i32_0 = arith.constant 0 : i32
    %c0_i32_1 = arith.constant 0 : i32
    return %c0_i32, %c0_i32_0 : i32, i32
  }
  func.func @transform_2(%arg0: i32) -> (i32, i32) {
    %c0_i32 = arith.constant 0 : i32
    %c0_i32_0 = arith.constant 0 : i32
    %c0_i32_1 = arith.constant 0 : i32
    return %c0_i32, %c0_i32_0 : i32, i32
  }
  func.func @transform_3(%arg0: i32) -> (i32, i32) {
    %c0_i32 = arith.constant 0 : i32
    %c0_i32_0 = arith.constant 0 : i32
    %c0_i32_1 = arith.constant 0 : i32
    return %c0_i32, %c0_i32_0 : i32, i32
  }
  func.func @transform_4(%arg0: i32) -> (i32, i32) {
    %c0_i32 = arith.constant 0 : i32
    %c0_i32_0 = arith.constant 0 : i32
    %c0_i32_1 = arith.constant 0 : i32
    return %c0_i32, %c0_i32_0 : i32, i32
  }
  func.func @transform_5(%arg0: i32) -> (i32, i32) {
    %c0_i32 = arith.constant 0 : i32
    %c0_i32_0 = arith.constant 0 : i32
    %c0_i32_1 = arith.constant 0 : i32
    return %c0_i32, %c0_i32_0 : i32, i32
  }
  func.func @transform_6(%arg0: i32) -> (i32, i32) {
    %c0_i32 = arith.constant 0 : i32
    %c0_i32_0 = arith.constant 0 : i32
    %c0_i32_1 = arith.constant 0 : i32
    return %c0_i32, %c0_i32_0 : i32, i32
  }
  func.func @transform_7(%arg0: i32) -> (i32, i32) {
    %c0_i32 = arith.constant 0 : i32
    %c0_i32_0 = arith.constant 0 : i32
    %c0_i32_1 = arith.constant 0 : i32
    return %c0_i32, %c0_i32_0 : i32, i32
  }
  func.func @transform_8(%arg0: i32) -> (i32, i32) {
    %c0_i32 = arith.constant 0 : i32
    %c0_i32_0 = arith.constant 0 : i32
    %c0_i32_1 = arith.constant 0 : i32
    return %c0_i32, %c0_i32_0 : i32, i32
  }
  func.func @transform_9(%arg0: i32) -> (i32, i32) {
    %c0_i32 = arith.constant 0 : i32
    %c0_i32_0 = arith.constant 0 : i32
    %c0_i32_1 = arith.constant 0 : i32
    return %c0_i32, %c0_i32_0 : i32, i32
  }
  func.func @transform_10(%arg0: i32) -> (i32, i32) {
    %c0_i32 = arith.constant 0 : i32
    %c0_i32_0 = arith.constant 0 : i32
    %c0_i32_1 = arith.constant 0 : i32
    return %c0_i32, %c0_i32_0 : i32, i32
  }
  func.func @transform_11(%arg0: i32) -> (i32, i32) {
    %c0_i32 = arith.constant 0 : i32
    %c0_i32_0 = arith.constant 0 : i32
    return %arg0, %c0_i32 : i32, i32
  }
}

</mosaic_0001>

<llo_original>
// kernel: tpu_custom_call.1
$region0: #{tpu_custom_call.1}
  #allocation0 [shape = 'u32[]', space=smem, size = 0x4, offset = 0x4, fixed_abs, tag = 'smem constant byte address 0x4 - core index']
  #allocation1 [shape = 'u32[144,128]{1,0:T(1,128)}', space=vmem, size = 0x12000, scoped, tag = 'internal scratch']
  %s0 = inlined_call_operand.hbm [shape: f32[8,16], index: 0, kind: input, shape index: {}]
  %s1 = inlined_call_operand.hbm [shape: bf16[16,128], index: 1, kind: input, shape index: {}]
  %s2 = inlined_call_operand.vmem [shape: f32[1,128], index: 2, kind: input, shape index: {}]
  %s3 = inlined_call_operand.vmem [shape: f32[1,128], index: 3, kind: input, shape index: {}]
  %s4 = inlined_call_operand.vmem [shape: f32[1,128], index: 4, kind: input, shape index: {}]
  %s5 = inlined_call_operand.hbm [shape: bf16[128,128], index: 5, kind: input, shape index: {}]
  %s6 = inlined_call_operand.vmem [shape: f32[1,128], index: 6, kind: input, shape index: {}]
  %s7 = inlined_call_operand.vmem [shape: f32[1,128], index: 7, kind: input, shape index: {}]
  %s8 = inlined_call_operand.vmem [shape: f32[1,128], index: 8, kind: input, shape index: {}]
  %s9 = inlined_call_operand.hbm [shape: bf16[128,128], index: 9, kind: input, shape index: {}]
  %s10 = inlined_call_operand.vmem [shape: f32[1,128], index: 10, kind: input, shape index: {}]
  %s11 = inlined_call_operand.hbm [shape: f32[8,128], index: 11, kind: output, shape index: {}]
  %s12 = sld [smem:[#allocation0]]
  $region70: #{tpu_custom_call.1} parent=0
    _
  %s14 = ssub.s32 1, %s12
  %s15 = scalar_select 0, %s14, %s12
  $region1: #{tpu_custom_call.1} parent=0
    #allocation2 [shape = 'u8[4096]{0}', space=vmem, size = 0x1000, scoped, tag = 'input window, operand 0, single buffered']
    #allocation3 [shape = 's32[1]{0}', space=sflag, size = 0x4, scoped, tag = 'scoped memory for tpu_custom_call.1']
    #allocation4 [shape = 's32[1]{0}', space=sflag, size = 0x4, scoped, tag = 'scoped memory for tpu_custom_call.1']
    #allocation5 [shape = 'u8[4096]{0}', space=vmem, size = 0x1000, scoped, tag = 'input window, operand 1, single buffered']
    #allocation6 [shape = 's32[1]{0}', space=sflag, size = 0x4, scoped, tag = 'scoped memory for tpu_custom_call.1']
    #allocation7 [shape = 'u8[32768]{0}', space=vmem, size = 0x8000, scoped, tag = 'input window, operand 5, single buffered']
    #allocation8 [shape = 'u8[32768]{0}', space=vmem, size = 0x8000, scoped, tag = 'input window, operand 9, single buffered']
    #allocation9 [shape = 's32[1]{0}', space=sflag, size = 0x4, scoped, tag = 'scoped memory for tpu_custom_call.1']
    #allocation10 [shape = 'u8[4096]{0}', space=vmem, size = 0x1000, scoped, tag = 'output window, operand 0, single buffered']
    %16 = vsyncpa [#allocation3], 0
    %17 = vsyncpa [#allocation6], 0
    %18 = vsyncpa [#allocation9], 0
    %19 = vsyncpa [#allocation4], 0
    // Predicated region
    $region2: #{tpu_custom_call.1} parent=1 // pred_check
      _
    $region3: #{tpu_custom_call.1} parent=1 // pred_check_branch
      %21 = sbr.rel (0) target = $region5
    $region4: #{tpu_custom_call.1} parent=1 // pred_region
      %s23 = ssub.s32 128, 128
      %24 = vsyncadd [#allocation3], %s23
      %s26 = sshll.u32 [#allocation2], 4
      %s27 = int_to_ptr.vmem [resolvable:$true] %s26
      %29 = dma.hbm_to_vmem [thread:$0]  %s0, 128, %s27, [#allocation3]
    $region5: #{tpu_custom_call.1} parent=1 // pred_fallthru
      _
    // Predicated region
    $region6: #{tpu_custom_call.1} parent=1 // pred_check
      _
    $region7: #{tpu_custom_call.1} parent=1 // pred_check_branch
      %31 = sbr.rel (0) target = $region9
    $region8: #{tpu_custom_call.1} parent=1 // pred_region
      %s33 = ssub.s32 128, 128
      %34 = vsyncadd [#allocation6], %s33
      %s35 = sshll.u32 [#allocation5], 4
      %s36 = int_to_ptr.vmem [resolvable:$true] %s35
      %41 = dma.hbm_to_vmem [thread:$0]  %s1, 128, %s36, [#allocation6], 64, 64, 4
    $region9: #{tpu_custom_call.1} parent=1 // pred_fallthru
      _
    // Predicated region
    $region10: #{tpu_custom_call.1} parent=1 // pred_check
      _
    $region11: #{tpu_custom_call.1} parent=1 // pred_check_branch
      %43 = sbr.rel (0) target = $region13
    $region12: #{tpu_custom_call.1} parent=1 // pred_region
      _
    $region13: #{tpu_custom_call.1} parent=1 // pred_fallthru
      _
    // Predicated region
    $region14: #{tpu_custom_call.1} parent=1 // pred_check
      _
    $region15: #{tpu_custom_call.1} parent=1 // pred_check_branch
      %45 = sbr.rel (0) target = $region17
    $region16: #{tpu_custom_call.1} parent=1 // pred_region
      _
    $region17: #{tpu_custom_call.1} parent=1 // pred_fallthru
      _
    // Predicated region
    $region18: #{tpu_custom_call.1} parent=1 // pred_check
      _
    $region19: #{tpu_custom_call.1} parent=1 // pred_check_branch
      %47 = sbr.rel (0) target = $region21
    $region20: #{tpu_custom_call.1} parent=1 // pred_region
      _
    $region21: #{tpu_custom_call.1} parent=1 // pred_fallthru
      _
    // Predicated region
    $region22: #{tpu_custom_call.1} parent=1 // pred_check
      _
    $region23: #{tpu_custom_call.1} parent=1 // pred_check_branch
      %49 = sbr.rel (0) target = $region25
    $region24: #{tpu_custom_call.1} parent=1 // pred_region
      %s51 = ssub.s32 1024, 1024
      %52 = vsyncadd [#allocation6], %s51
      %s53 = sshll.u32 [#allocation7], 4
      %s54 = int_to_ptr.vmem [resolvable:$true] %s53
      %59 = dma.hbm_to_vmem [thread:$0]  %s5, 1024, %s54, [#allocation6], 64, 64, 4
    $region25: #{tpu_custom_call.1} parent=1 // pred_fallthru
      _
    // Predicated region
    $region26: #{tpu_custom_call.1} parent=1 // pred_check
      _
    $region27: #{tpu_custom_call.1} parent=1 // pred_check_branch
      %61 = sbr.rel (0) target = $region29
    $region28: #{tpu_custom_call.1} parent=1 // pred_region
      _
    $region29: #{tpu_custom_call.1} parent=1 // pred_fallthru
      _
    // Predicated region
    $region30: #{tpu_custom_call.1} parent=1 // pred_check
      _
    $region31: #{tpu_custom_call.1} parent=1 // pred_check_branch
      %63 = sbr.rel (0) target = $region33
    $region32: #{tpu_custom_call.1} parent=1 // pred_region
      _
    $region33: #{tpu_custom_call.1} parent=1 // pred_fallthru
      _
    // Predicated region
    $region34: #{tpu_custom_call.1} parent=1 // pred_check
      _
    $region35: #{tpu_custom_call.1} parent=1 // pred_check_branch
      %65 = sbr.rel (0) target = $region37
    $region36: #{tpu_custom_call.1} parent=1 // pred_region
      _
    $region37: #{tpu_custom_call.1} parent=1 // pred_fallthru
      _
    // Predicated region
    $region38: #{tpu_custom_call.1} parent=1 // pred_check
      _
    $region39: #{tpu_custom_call.1} parent=1 // pred_check_branch
      %67 = sbr.rel (0) target = $region41
    $region40: #{tpu_custom_call.1} parent=1 // pred_region
      %s69 = ssub.s32 1024, 1024
      %70 = vsyncadd [#allocation9], %s69
      %s71 = sshll.u32 [#allocation8], 4
      %s72 = int_to_ptr.vmem [resolvable:$true] %s71
      %77 = dma.hbm_to_vmem [thread:$0]  %s9, 1024, %s72, [#allocation9], 64, 64, 4
    $region41: #{tpu_custom_call.1} parent=1 // pred_fallthru
      _
    // Predicated region
    $region42: #{tpu_custom_call.1} parent=1 // pred_check
      _
    $region43: #{tpu_custom_call.1} parent=1 // pred_check_branch
      %79 = sbr.rel (0) target = $region45
    $region44: #{tpu_custom_call.1} parent=1 // pred_region
      _
    $region45: #{tpu_custom_call.1} parent=1 // pred_fallthru
      _
    // Predicated region
    $region46: #{tpu_custom_call.1} parent=1 // pred_check
      _
    $region47: #{tpu_custom_call.1} parent=1 // pred_check_branch
      %81 = sbr.rel (0) target = $region49
    $region48: #{tpu_custom_call.1} parent=1 // pred_region
      %82 = dma.done [#allocation3], 128
    $region49: #{tpu_custom_call.1} parent=1 // pred_fallthru
      _
    // Predicated region
    $region50: #{tpu_custom_call.1} parent=1 // pred_check
      _
    $region51: #{tpu_custom_call.1} parent=1 // pred_check_branch
      %84 = sbr.rel (0) target = $region53
    $region52: #{tpu_custom_call.1} parent=1 // pred_region
      %85 = dma.done [#allocation6], 128
    $region53: #{tpu_custom_call.1} parent=1 // pred_fallthru
      _
    // Predicated region
    $region54: #{tpu_custom_call.1} parent=1 // pred_check
      _
    $region55: #{tpu_custom_call.1} parent=1 // pred_check_branch
      %87 = sbr.rel (0) target = $region57
    $region56: #{tpu_custom_call.1} parent=1 // pred_region
      %88 = dma.done [#allocation6], 1024
    $region57: #{tpu_custom_call.1} parent=1 // pred_fallthru
      _
    // Predicated region
    $region58: #{tpu_custom_call.1} parent=1 // pred_check
      _
    $region59: #{tpu_custom_call.1} parent=1 // pred_check_branch
      %90 = sbr.rel (0) target = $region61
    $region60: #{tpu_custom_call.1} parent=1 // pred_region
      %91 = dma.done [#allocation9], 1024
    $region61: #{tpu_custom_call.1} parent=1 // pred_fallthru
      _
    %v93 = vlaneseq
    %v94 = vand.u32 %v93, 127
    %vm95 = vcmp.lt.s32.totalorder %v94, 32
    %v96 = vsel %vm95, 1, 0
    %v97 = vcvt.s32.f32 %v96
    %v98 = vld [vmem:[#allocation2] sm:$0xff]
    %v99 = vpack.c.bf16 %v98, %v98
    %v100 = vld [vmem:[#allocation5] sm:$0xf]
    %v101 = vld [vmem:[#allocation5 + $0x4] sm:$0xf]
    %v102 = vld [vmem:[%s2] sm:$0x1]
    %v104 = vlaneseq
    %v105 = vshrl.u32 %v104, 7
    %v106 = vsub.s32 0, %v105
    %v107 = vrot.slane %v102, %v106
    %v111 = vunpack.c.l.b16 %v100
    %v112 = vunpack.c.l.b16 %v101
    %v113 = vpack.c.b16 %v112, %v111
    %vm115 = vcmask 130048
    %v117 = vsel %vm115, %v99, 0
    %119 = vmatprep.subr.bf16.mxu0 0
    %120 = vmatpush1.bf16.msra.mxu0 0
    %121 = vmatprep.subr.bf16.mxu0 0
    %122 = vmatpush1.bf16.msra.mxu0 0
    %123 = vmatprep.subr.bf16.mxu0 0
    %124 = vmatpush1.bf16.msra.mxu0 0
    %125 = vmatprep.subr.bf16.mxu0 0
    %126 = vmatpush1.bf16.msra.mxu0 0
    %127 = vmatprep.subr.bf16.mxu0 0
    %128 = vmatpush1.bf16.msra.mxu0 0
    %129 = vmatprep.subr.bf16.mxu0 0
    %130 = vmatpush1.bf16.msra.mxu0 0
    %131 = vmatprep.subr.bf16.mxu0 0
    %132 = vmatpush1.bf16.msra.mxu0 0
    %133 = vmatprep.subr.bf16.mxu0 0
    %134 = vmatpush1.bf16.msra.mxu0 %v113
    %135 = vmatprep.subr.bf16.mxu0 0
    %136 = vmatpush2.bf16.msra.mxu0 0
    %137 = vmatprep.subr.bf16.mxu0 0
    %138 = vmatpush2.bf16.msra.mxu0 0
    %139 = vmatprep.subr.bf16.mxu0 0
    %140 = vmatpush2.bf16.msra.mxu0 0
    %141 = vmatprep.subr.bf16.mxu0 0
    %142 = vmatpush2.bf16.msra.mxu0 0
    %143 = vmatprep.subr.bf16.mxu0 0
    %144 = vmatpush2.bf16.msra.mxu0 0
    %145 = vmatprep.subr.bf16.mxu0 0
    %146 = vmatpush2.bf16.msra.mxu0 0
    %147 = vmatprep.subr.bf16.mxu0 0
    %148 = vmatpush2.bf16.msra.mxu0 0
    %149 = vmatprep.subr.bf16.mxu0 0
    %150 = vmatpush2.bf16.msra.mxu0 0
    %151 = vmatprep.mubr.bf16.mxu0 0
    %152 = vmatmul.mubr.bf16.gmra.mxu0 %v117
    %v153 = vpop.f32.mrf.mxu0
    %v154 = vadd.f32 %v107, %v153
    %v155 = vpop.f32.mrf.mxu0
    %v156 = vpop.f32.mrf.mxu0
    %v157 = vpop.f32.mrf.mxu0
    %158 = vdwg.mxu0
    %v159 = vld [vmem:[%s3] sm:$0x1]
    %v160 = vld [vmem:[%s4] sm:$0x1]
    %161 = vadd.xlane.f32.xlu0 %v154
    %v162 = vpop.xlane.xlu0 %161
    %v163 = vmul.f32 %v162, 0.03125
    %v164 = vsub.f32 %v154, %v163
    %v165 = vmul.f32 %v164, %v97
    %v166 = vmul.f32 %v165, %v165
    %167 = vadd.xlane.f32.xlu0 %v166
    %v168 = vpop.xlane.xlu0 %167
    %v169 = vmul.f32 %v168, 0.03125
    %v170 = vadd.f32 %v169, 1e-05
    %v171 = vrsqrt.pop %v170
    %v172 = vmul.f32 %v165, %v171
    %v174 = vlaneseq
    %v175 = vshrl.u32 %v174, 7
    %v176 = vsub.s32 0, %v175
    %v177 = vrot.slane %v159, %v176
    %v179 = vmul.f32 %v172, %v177
    %v181 = vlaneseq
    %v182 = vshrl.u32 %v181, 7
    %v183 = vsub.s32 0, %v182
    %v184 = vrot.slane %v160, %v183
    %v186 = vadd.f32 %v179, %v184
    %v187 = vmax.f32 %v186, 0.0
    %v188 = vpack.c.bf16 %v187, %v187
    %v189 = vld [vmem:[#allocation7] sm:$0xf]
    %v190 = vld [vmem:[#allocation7 + $0x4] sm:$0xf]
    %v191 = vld [vmem:[#allocation7 + $0x8] sm:$0xf]
    %v192 = vld [vmem:[#allocation7 + $0xc] sm:$0xf]
    %v193 = vld [vmem:[#allocation7 + $0x10] sm:$0xf]
    %v194 = vld [vmem:[#allocation7 + $0x14] sm:$0xf]
    %v195 = vld [vmem:[#allocation7 + $0x18] sm:$0xf]
    %v196 = vld [vmem:[#allocation7 + $0x1c] sm:$0xf]
    %v197 = vld [vmem:[#allocation7 + $0x20] sm:$0xf]
    %v198 = vld [vmem:[#allocation7 + $0x24] sm:$0xf]
    %v199 = vld [vmem:[#allocation7 + $0x28] sm:$0xf]
    %v200 = vld [vmem:[#allocation7 + $0x2c] sm:$0xf]
    %v201 = vld [vmem:[#allocation7 + $0x30] sm:$0xf]
    %v202 = vld [vmem:[#allocation7 + $0x34] sm:$0xf]
    %v203 = vld [vmem:[#allocation7 + $0x38] sm:$0xf]
    %v204 = vld [vmem:[#allocation7 + $0x3c] sm:$0xf]
    %v205 = vld [vmem:[%s6] sm:$0x1]
    %v207 = vlaneseq
    %v208 = vshrl.u32 %v207, 7
    %v209 = vsub.s32 0, %v208
    %v210 = vrot.slane %v205, %v209
    %v228 = vunpack.c.l.b16 %v189
    %v229 = vunpack.c.l.b16 %v190
    %v230 = vunpack.c.l.b16 %v191
    %v231 = vunpack.c.l.b16 %v192
    %v232 = vunpack.c.l.b16 %v193
    %v233 = vunpack.c.l.b16 %v194
    %v234 = vunpack.c.l.b16 %v195
    %v235 = vunpack.c.l.b16 %v196
    %v236 = vunpack.c.l.b16 %v197
    %v237 = vunpack.c.l.b16 %v198
    %v238 = vunpack.c.l.b16 %v199
    %v239 = vunpack.c.l.b16 %v200
    %v240 = vunpack.c.l.b16 %v201
    %v241 = vunpack.c.l.b16 %v202
    %v242 = vunpack.c.l.b16 %v203
    %v243 = vunpack.c.l.b16 %v204
    %v244 = vpack.c.b16 %v229, %v228
    %v245 = vpack.c.b16 %v231, %v230
    %v246 = vpack.c.b16 %v233, %v232
    %v247 = vpack.c.b16 %v235, %v234
    %v248 = vpack.c.b16 %v237, %v236
    %v249 = vpack.c.b16 %v239, %v238
    %v250 = vpack.c.b16 %v241, %v240
    %v251 = vpack.c.b16 %v243, %v242
    %260 = vmatprep.subr.bf16.mxu0 0
    %261 = vmatpush1.bf16.msra.mxu0 %v251
    %262 = vmatprep.subr.bf16.mxu0 0
    %263 = vmatpush1.bf16.msra.mxu0 %v250
    %264 = vmatprep.subr.bf16.mxu0 0
    %265 = vmatpush1.bf16.msra.mxu0 %v249
    %266 = vmatprep.subr.bf16.mxu0 0
    %267 = vmatpush1.bf16.msra.mxu0 %v248
    %268 = vmatprep.subr.bf16.mxu0 0
    %269 = vmatpush1.bf16.msra.mxu0 %v247
    %270 = vmatprep.subr.bf16.mxu0 0
    %271 = vmatpush1.bf16.msra.mxu0 %v246
    %272 = vmatprep.subr.bf16.mxu0 0
    %273 = vmatpush1.bf16.msra.mxu0 %v245
    %274 = vmatprep.subr.bf16.mxu0 0
    %275 = vmatpush1.bf16.msra.mxu0 %v244
    %276 = vmatprep.subr.bf16.mxu0 0
    %277 = vmatpush2.bf16.msra.mxu0 0
    %278 = vmatprep.subr.bf16.mxu0 0
    %279 = vmatpush2.bf16.msra.mxu0 0
    %280 = vmatprep.subr.bf16.mxu0 0
    %281 = vmatpush2.bf16.msra.mxu0 0
    %282 = vmatprep.subr.bf16.mxu0 0
    %283 = vmatpush2.bf16.msra.mxu0 0
    %284 = vmatprep.subr.bf16.mxu0 0
    %285 = vmatpush2.bf16.msra.mxu0 0
    %286 = vmatprep.subr.bf16.mxu0 0
    %287 = vmatpush2.bf16.msra.mxu0 0
    %288 = vmatprep.subr.bf16.mxu0 0
    %289 = vmatpush2.bf16.msra.mxu0 0
    %290 = vmatprep.subr.bf16.mxu0 0
    %291 = vmatpush2.bf16.msra.mxu0 0
    %292 = vmatprep.mubr.bf16.mxu0 0
    %293 = vmatmul.mubr.bf16.gmra.mxu0 %v188
    %v294 = vpop.f32.mrf.mxu0
    %v295 = vadd.f32 %v210, %v294
    %v296 = vpop.f32.mrf.mxu0
    %v297 = vpop.f32.mrf.mxu0
    %v298 = vpop.f32.mrf.mxu0
    %299 = vdwg.mxu0
    %v300 = vld [vmem:[%s7] sm:$0x1]
    %v301 = vld [vmem:[%s8] sm:$0x1]
    %302 = vadd.xlane.f32.xlu0 %v295
    %v303 = vpop.xlane.xlu0 %302
    %v304 = vmul.f32 %v303, 0.03125
    %v305 = vsub.f32 %v295, %v304
    %v306 = vmul.f32 %v305, %v97
    %v307 = vmul.f32 %v306, %v306
    %308 = vadd.xlane.f32.xlu0 %v307
    %v309 = vpop.xlane.xlu0 %308
    %v310 = vmul.f32 %v309, 0.03125
    %v311 = vadd.f32 %v310, 1e-05
    %v312 = vrsqrt.pop %v311
    %v313 = vmul.f32 %v306, %v312
    %v315 = vlaneseq
    %v316 = vshrl.u32 %v315, 7
    %v317 = vsub.s32 0, %v316
    %v318 = vrot.slane %v300, %v317
    %v320 = vmul.f32 %v313, %v318
    %v322 = vlaneseq
    %v323 = vshrl.u32 %v322, 7
    %v324 = vsub.s32 0, %v323
    %v325 = vrot.slane %v301, %v324
    %v327 = vadd.f32 %v320, %v325
    %v328 = vmax.f32 %v327, 0.0
    %v329 = vpack.c.bf16 %v328, %v328
    %v330 = vld [vmem:[#allocation8] sm:$0xf]
    %v331 = vld [vmem:[#allocation8 + $0x4] sm:$0xf]
    %v332 = vld [vmem:[#allocation8 + $0x8] sm:$0xf]
    %v333 = vld [vmem:[#allocation8 + $0xc] sm:$0xf]
    %v334 = vld [vmem:[#allocation8 + $0x10] sm:$0xf]
    %v335 = vld [vmem:[#allocation8 + $0x14] sm:$0xf]
    %v336 = vld [vmem:[#allocation8 + $0x18] sm:$0xf]
    %v337 = vld [vmem:[#allocation8 + $0x1c] sm:$0xf]
    %v338 = vld [vmem:[#allocation8 + $0x20] sm:$0xf]
    %v339 = vld [vmem:[#allocation8 + $0x24] sm:$0xf]
    %v340 = vld [vmem:[#allocation8 + $0x28] sm:$0xf]
    %v341 = vld [vmem:[#allocation8 + $0x2c] sm:$0xf]
    %v342 = vld [vmem:[#allocation8 + $0x30] sm:$0xf]
    %v343 = vld [vmem:[#allocation8 + $0x34] sm:$0xf]
    %v344 = vld [vmem:[#allocation8 + $0x38] sm:$0xf]
    %v345 = vld [vmem:[#allocation8 + $0x3c] sm:$0xf]
    %v346 = vld [vmem:[%s10] sm:$0x1]
    %v348 = vlaneseq
    %v349 = vshrl.u32 %v348, 7
    %v350 = vsub.s32 0, %v349
    %v351 = vrot.slane %v346, %v350
    %v369 = vunpack.c.l.b16 %v330
    %v370 = vunpack.c.l.b16 %v331
    %v371 = vunpack.c.l.b16 %v332
    %v372 = vunpack.c.l.b16 %v333
    %v373 = vunpack.c.l.b16 %v334
    %v374 = vunpack.c.l.b16 %v335
    %v375 = vunpack.c.l.b16 %v336
    %v376 = vunpack.c.l.b16 %v337
    %v377 = vunpack.c.l.b16 %v338
    %v378 = vunpack.c.l.b16 %v339
    %v379 = vunpack.c.l.b16 %v340
    %v380 = vunpack.c.l.b16 %v341
    %v381 = vunpack.c.l.b16 %v342
    %v382 = vunpack.c.l.b16 %v343
    %v383 = vunpack.c.l.b16 %v344
    %v384 = vunpack.c.l.b16 %v345
    %v385 = vpack.c.b16 %v370, %v369
    %v386 = vpack.c.b16 %v372, %v371
    %v387 = vpack.c.b16 %v374, %v373
    %v388 = vpack.c.b16 %v376, %v375
    %v389 = vpack.c.b16 %v378, %v377
    %v390 = vpack.c.b16 %v380, %v379
    %v391 = vpack.c.b16 %v382, %v381
    %v392 = vpack.c.b16 %v384, %v383
    %401 = vmatprep.subr.bf16.mxu0 0
    %402 = vmatpush1.bf16.msra.mxu0 %v392
    %403 = vmatprep.subr.bf16.mxu0 0
    %404 = vmatpush1.bf16.msra.mxu0 %v391
    %405 = vmatprep.subr.bf16.mxu0 0
    %406 = vmatpush1.bf16.msra.mxu0 %v390
    %407 = vmatprep.subr.bf16.mxu0 0
    %408 = vmatpush1.bf16.msra.mxu0 %v389
    %409 = vmatprep.subr.bf16.mxu0 0
    %410 = vmatpush1.bf16.msra.mxu0 %v388
    %411 = vmatprep.subr.bf16.mxu0 0
    %412 = vmatpush1.bf16.msra.mxu0 %v387
    %413 = vmatprep.subr.bf16.mxu0 0
    %414 = vmatpush1.bf16.msra.mxu0 %v386
    %415 = vmatprep.subr.bf16.mxu0 0
    %416 = vmatpush1.bf16.msra.mxu0 %v385
    %417 = vmatprep.subr.bf16.mxu0 0
    %418 = vmatpush2.bf16.msra.mxu0 0
    %419 = vmatprep.subr.bf16.mxu0 0
    %420 = vmatpush2.bf16.msra.mxu0 0
    %421 = vmatprep.subr.bf16.mxu0 0
    %422 = vmatpush2.bf16.msra.mxu0 0
    %423 = vmatprep.subr.bf16.mxu0 0
    %424 = vmatpush2.bf16.msra.mxu0 0
    %425 = vmatprep.subr.bf16.mxu0 0
    %426 = vmatpush2.bf16.msra.mxu0 0
    %427 = vmatprep.subr.bf16.mxu0 0
    %428 = vmatpush2.bf16.msra.mxu0 0
    %429 = vmatprep.subr.bf16.mxu0 0
    %430 = vmatpush2.bf16.msra.mxu0 0
    %431 = vmatprep.subr.bf16.mxu0 0
    %432 = vmatpush2.bf16.msra.mxu0 0
    %433 = vmatprep.mubr.bf16.mxu0 0
    %434 = vmatmul.mubr.bf16.gmra.mxu0 %v329
    %v435 = vpop.f32.mrf.mxu0
    %v436 = vadd.f32 %v351, %v435
    %v437 = vpop.f32.mrf.mxu0
    %v438 = vpop.f32.mrf.mxu0
    %v439 = vpop.f32.mrf.mxu0
    %440 = vdwg.mxu0
    %v441 = vtanh.pop %v436
    %442 = vst [vmem:[#allocation10] sm:$0xff] %v441
    // Predicated region
    $region62: #{tpu_custom_call.1} parent=1 // pred_check
      _
    $region63: #{tpu_custom_call.1} parent=1 // pred_check_branch
      %444 = sbr.rel (0) target = $region65
    $region64: #{tpu_custom_call.1} parent=1 // pred_region
      %s446 = ssub.s32 128, 128
      %447 = vsyncadd [#allocation4], %s446
      %s449 = sshll.u32 [#allocation10], 4
      %s450 = int_to_ptr.vmem [resolvable:$true] %s449
      %452 = dma.vmem_to_hbm [thread:$0]  %s450, 128, %s11, [#allocation4]
    $region65: #{tpu_custom_call.1} parent=1 // pred_fallthru
      _
    // Predicated region
    $region66: #{tpu_custom_call.1} parent=1 // pred_check
      _
    $region67: #{tpu_custom_call.1} parent=1 // pred_check_branch
      %454 = sbr.rel (0) target = $region69
    $region68: #{tpu_custom_call.1} parent=1 // pred_region
      %455 = dma.done [#allocation4], 128
    $region69: #{tpu_custom_call.1} parent=1 // pred_fallthru
      _
    %456 = vsyncpa [#allocation3], 1
    %457 = vsyncpa [#allocation6], 1
    %458 = vsyncpa [#allocation9], 1
    %459 = vsyncpa [#allocation4], 1

// kernel: tpu_custom_call.1
$region0: #{tpu_custom_call.1}
  #allocation0 [shape = 'u32[]', space=smem, size = 0x4, offset = 0x4, fixed_abs, tag = 'smem constant byte address 0x4 - core index']
  #allocation1 [shape = 'u32[144,128]{1,0:T(1,128)}', space=vmem, size = 0x12000, scoped, tag = 'internal scratch']
  %s0 = inlined_call_operand.hbm [shape: f32[8,16], index: 0, kind: input, shape index: {}]
  %s1 = inlined_call_operand.hbm [shape: bf16[16,128], index: 1, kind: input, shape index: {}]
  %s2 = inlined_call_operand.vmem [shape: f32[1,128], index: 2, kind: input, shape index: {}]
  %s3 = inlined_call_operand.vmem [shape: f32[1,128], index: 3, kind: input, shape index: {}]
  %s4 = inlined_call_operand.vmem [shape: f32[1,128], index: 4, kind: input, shape index: {}]
  %s5 = inlined_call_operand.hbm [shape: bf16[128,128], index: 5, kind: input, shape index: {}]
  %s6 = inlined_call_operand.vmem [shape: f32[1,128], index: 6, kind: input, shape index: {}]
  %s7 = inlined_call_operand.vmem [shape: f32[1,128], index: 7, kind: input, shape index: {}]
  %s8 = inlined_call_operand.vmem [shape: f32[1,128], index: 8, kind: input, shape index: {}]
  %s9 = inlined_call_operand.hbm [shape: bf16[128,128], index: 9, kind: input, shape index: {}]
  %s10 = inlined_call_operand.vmem [shape: f32[1,128], index: 10, kind: input, shape index: {}]
  %s11 = inlined_call_operand.hbm [shape: f32[8,128], index: 11, kind: output, shape index: {}]
  %s12 = sld [smem:[#allocation0]]
  $region70: #{tpu_custom_call.1} parent=0
    _
  %s14 = ssub.s32 1, %s12
  %s15 = scalar_select 0, %s14, %s12
  $region1: #{tpu_custom_call.1} parent=0
    #allocation2 [shape = 'u8[4096]{0}', space=vmem, size = 0x1000, scoped, tag = 'input window, operand 0, single buffered']
    #allocation3 [shape = 's32[1]{0}', space=sflag, size = 0x4, scoped, tag = 'scoped memory for tpu_custom_call.1']
    #allocation4 [shape = 's32[1]{0}', space=sflag, size = 0x4, scoped, tag = 'scoped memory for tpu_custom_call.1']
    #allocation5 [shape = 'u8[4096]{0}', space=vmem, size = 0x1000, scoped, tag = 'input window, operand 1, single buffered']
    #allocation6 [shape = 's32[1]{0}', space=sflag, size = 0x4, scoped, tag = 'scoped memory for tpu_custom_call.1']
    #allocation7 [shape = 'u8[32768]{0}', space=vmem, size = 0x8000, scoped, tag = 'input window, operand 5, single buffered']
    #allocation8 [shape = 'u8[32768]{0}', space=vmem, size = 0x8000, scoped, tag = 'input window, operand 9, single buffered']
    #allocation9 [shape = 's32[1]{0}', space=sflag, size = 0x4, scoped, tag = 'scoped memory for tpu_custom_call.1']
    #allocation10 [shape = 'u8[4096]{0}', space=vmem, size = 0x1000, scoped, tag = 'output window, operand 0, single buffered']
    %16 = vsyncpa [#allocation3], 0
    %17 = vsyncpa [#allocation6], 0
    %18 = vsyncpa [#allocation9], 0
    %19 = vsyncpa [#allocation4], 0
    // Predicated region
    $region2: #{tpu_custom_call.1} parent=1 // pred_check
      _
    $region3: #{tpu_custom_call.1} parent=1 // pred_check_branch
      %21 = sbr.rel (0) target = $region5
    $region4: #{tpu_custom_call.1} parent=1 // pred_region
      %s23 = ssub.s32 128, 128
      %24 = vsyncadd [#allocation3], %s23
      %s26 = sshll.u32 [#allocation2], 4
      %s27 = int_to_ptr.vmem [resolvable:$true] %s26
      %29 = dma.hbm_to_vmem [thread:$0]  %s0, 128, %s27, [#allocation3]
    $region5: #{tpu_custom_call.1} parent=1 // pred_fallthru
      _
    // Predicated region
    $region6: #{tpu_custom_call.1} parent=1 // pred_check
      _
    $region7: #{tpu_custom_call.1} parent=1 // pred_check_branch
      %31 = sbr.rel (0) target = $region9
    $region8: #{tpu_custom_call.1} parent=1 // pred_region
      %s33 = ssub.s32 128, 128
      %34 = vsyncadd [#allocation6], %s33
      %s35 = sshll.u32 [#allocation5], 4
      %s36 = int_to_ptr.vmem [resolvable:$true] %s35
      %41 = dma.hbm_to_vmem [thread:$0]  %s1, 128, %s36, [#allocation6], 64, 64, 4
    $region9: #{tpu_custom_call.1} parent=1 // pred_fallthru
      _
    // Predicated region
    $region10: #{tpu_custom_call.1} parent=1 // pred_check
      _
    $region11: #{tpu_custom_call.1} parent=1 // pred_check_branch
      %43 = sbr.rel (0) target = $region13
    $region12: #{tpu_custom_call.1} parent=1 // pred_region
      _
    $region13: #{tpu_custom_call.1} parent=1 // pred_fallthru
      _
    // Predicated region
    $region14: #{tpu_custom_call.1} parent=1 // pred_check
      _
    $region15: #{tpu_custom_call.1} parent=1 // pred_check_branch
      %45 = sbr.rel (0) target = $region17
    $region16: #{tpu_custom_call.1} parent=1 // pred_region
      _
    $region17: #{tpu_custom_call.1} parent=1 // pred_fallthru
      _
    // Predicated region
    $region18: #{tpu_custom_call.1} parent=1 // pred_check
      _
    $region19: #{tpu_custom_call.1} parent=1 // pred_check_branch
      %47 = sbr.rel (0) target = $region21
    $region20: #{tpu_custom_call.1} parent=1 // pred_region
      _
    $region21: #{tpu_custom_call.1} parent=1 // pred_fallthru
      _
    // Predicated region
    $region22: #{tpu_custom_call.1} parent=1 // pred_check
      _
    $region23: #{tpu_custom_call.1} parent=1 // pred_check_branch
      %49 = sbr.rel (0) target = $region25
    $region24: #{tpu_custom_call.1} parent=1 // pred_region
      %s51 = ssub.s32 1024, 1024
      %52 = vsyncadd [#allocation6], %s51
      %s53 = sshll.u32 [#allocation7], 4
      %s54 = int_to_ptr.vmem [resolvable:$true] %s53
      %59 = dma.hbm_to_vmem [thread:$0]  %s5, 1024, %s54, [#allocation6], 64, 64, 4
    $region25: #{tpu_custom_call.1} parent=1 // pred_fallthru
      _
    // Predicated region
    $region26: #{tpu_custom_call.1} parent=1 // pred_check
      _
    $region27: #{tpu_custom_call.1} parent=1 // pred_check_branch
      %61 = sbr.rel (0) target = $region29
    $region28: #{tpu_custom_call.1} parent=1 // pred_region
      _
    $region29: #{tpu_custom_call.1} parent=1 // pred_fallthru
      _
    // Predicated region
    $region30: #{tpu_custom_call.1} parent=1 // pred_check
      _
    $region31: #{tpu_custom_call.1} parent=1 // pred_check_branch
      %63 = sbr.rel (0) target = $region33
    $region32: #{tpu_custom_call.1} parent=1 // pred_region
      _
    $region33: #{tpu_custom_call.1} parent=1 // pred_fallthru
      _
    // Predicated region
    $region34: #{tpu_custom_call.1} parent=1 // pred_check
      _
    $region35: #{tpu_custom_call.1} parent=1 // pred_check_branch
      %65 = sbr.rel (0) target = $region37
    $region36: #{tpu_custom_call.1} parent=1 // pred_region
      _
    $region37: #{tpu_custom_call.1} parent=1 // pred_fallthru
      _
    // Predicated region
    $region38: #{tpu_custom_call.1} parent=1 // pred_check
      _
    $region39: #{tpu_custom_call.1} parent=1 // pred_check_branch
      %67 = sbr.rel (0) target = $region41
    $region40: #{tpu_custom_call.1} parent=1 // pred_region
      %s69 = ssub.s32 1024, 1024
      %70 = vsyncadd [#allocation9], %s69
      %s71 = sshll.u32 [#allocation8], 4
      %s72 = int_to_ptr.vmem [resolvable:$true] %s71
      %77 = dma.hbm_to_vmem [thread:$0]  %s9, 1024, %s72, [#allocation9], 64, 64, 4
    $region41: #{tpu_custom_call.1} parent=1 // pred_fallthru
      _
    // Predicated region
    $region42: #{tpu_custom_call.1} parent=1 // pred_check
      _
    $region43: #{tpu_custom_call.1} parent=1 // pred_check_branch
      %79 = sbr.rel (0) target = $region45
    $region44: #{tpu_custom_call.1} parent=1 // pred_region
      _
    $region45: #{tpu_custom_call.1} parent=1 // pred_fallthru
      _
    // Predicated region
    $region46: #{tpu_custom_call.1} parent=1 // pred_check
      _
    $region47: #{tpu_custom_call.1} parent=1 // pred_check_branch
      %81 = sbr.rel (0) target = $region49
    $region48: #{tpu_custom_call.1} parent=1 // pred_region
      %82 = dma.done [#allocation3], 128
    $region49: #{tpu_custom_call.1} parent=1 // pred_fallthru
      _
    // Predicated region
    $region50: #{tpu_custom_call.1} parent=1 // pred_check
      _
    $region51: #{tpu_custom_call.1} parent=1 // pred_check_branch
      %84 = sbr.rel (0) target = $region53
    $region52: #{tpu_custom_call.1} parent=1 // pred_region
      %85 = dma.done [#allocation6], 128
    $region53: #{tpu_custom_call.1} parent=1 // pred_fallthru
      _
    // Predicated region
    $region54: #{tpu_custom_call.1} parent=1 // pred_check
      _
    $region55: #{tpu_custom_call.1} parent=1 // pred_check_branch
      %87 = sbr.rel (0) target = $region57
    $region56: #{tpu_custom_call.1} parent=1 // pred_region
      %88 = dma.done [#allocation6], 1024
    $region57: #{tpu_custom_call.1} parent=1 // pred_fallthru
      _
    // Predicated region
    $region58: #{tpu_custom_call.1} parent=1 // pred_check
      _
    $region59: #{tpu_custom_call.1} parent=1 // pred_check_branch
      %90 = sbr.rel (0) target = $region61
    $region60: #{tpu_custom_call.1} parent=1 // pred_region
      %91 = dma.done [#allocation9], 1024
    $region61: #{tpu_custom_call.1} parent=1 // pred_fallthru
      _
    %v93 = vlaneseq
    %v94 = vand.u32 %v93, 127
    %vm95 = vcmp.lt.s32.totalorder %v94, 32
    %v96 = vsel %vm95, 1, 0
    %v97 = vcvt.s32.f32 %v96
    %v98 = vld [vmem:[#allocation2] sm:$0xff]
    %v99 = vpack.c.bf16 %v98, %v98
    %v100 = vld [vmem:[#allocation5] sm:$0xf]
    %v101 = vld [vmem:[#allocation5 + $0x4] sm:$0xf]
    %v102 = vld [vmem:[%s2] sm:$0x1]
    %v104 = vlaneseq
    %v105 = vshrl.u32 %v104, 7
    %v106 = vsub.s32 0, %v105
    %v107 = vrot.slane %v102, %v106
    %v111 = vunpack.c.l.b16 %v100
    %v112 = vunpack.c.l.b16 %v101
    %v113 = vpack.c.b16 %v112, %v111
    %vm115 = vcmask 130048
    %v117 = vsel %vm115, %v99, 0
    %119 = vmatprep.subr.bf16.mxu0 0
    %120 = vmatpush1.bf16.msra.mxu0 0
    %121 = vmatprep.subr.bf16.mxu0 0
    %122 = vmatpush1.bf16.msra.mxu0 0
    %123 = vmatprep.subr.bf16.mxu0 0
    %124 = vmatpush1.bf16.msra.mxu0 0
    %125 = vmatprep.subr.bf16.mxu0 0
    %126 = vmatpush1.bf16.msra.mxu0 0
    %127 = vmatprep.subr.bf16.mxu0 0
    %128 = vmatpush1.bf16.msra.mxu0 0
    %129 = vmatprep.subr.bf16.mxu0 0
    %130 = vmatpush1.bf16.msra.mxu0 0
    %131 = vmatprep.subr.bf16.mxu0 0
    %132 = vmatpush1.bf16.msra.mxu0 0
    %133 = vmatprep.subr.bf16.mxu0 0
    %134 = vmatpush1.bf16.msra.mxu0 %v113
    %135 = vmatprep.subr.bf16.mxu0 0
    %136 = vmatpush2.bf16.msra.mxu0 0
    %137 = vmatprep.subr.bf16.mxu0 0
    %138 = vmatpush2.bf16.msra.mxu0 0
    %139 = vmatprep.subr.bf16.mxu0 0
    %140 = vmatpush2.bf16.msra.mxu0 0
    %141 = vmatprep.subr.bf16.mxu0 0
    %142 = vmatpush2.bf16.msra.mxu0 0
    %143 = vmatprep.subr.bf16.mxu0 0
    %144 = vmatpush2.bf16.msra.mxu0 0
    %145 = vmatprep.subr.bf16.mxu0 0
    %146 = vmatpush2.bf16.msra.mxu0 0
    %147 = vmatprep.subr.bf16.mxu0 0
    %148 = vmatpush2.bf16.msra.mxu0 0
    %149 = vmatprep.subr.bf16.mxu0 0
    %150 = vmatpush2.bf16.msra.mxu0 0
    %151 = vmatprep.mubr.bf16.mxu0 0
    %152 = vmatmul.mubr.bf16.gmra.mxu0 %v117
    %v153 = vpop.f32.mrf.mxu0
    %v154 = vadd.f32 %v107, %v153
    %v155 = vpop.f32.mrf.mxu0
    %v156 = vpop.f32.mrf.mxu0
    %v157 = vpop.f32.mrf.mxu0
    %158 = vdwg.mxu0
    %v159 = vld [vmem:[%s3] sm:$0x1]
    %v160 = vld [vmem:[%s4] sm:$0x1]
    %161 = vadd.xlane.f32.xlu0 %v154
    %v162 = vpop.xlane.xlu0 %161
    %v163 = vmul.f32 %v162, 0.03125
    %v164 = vsub.f32 %v154, %v163
    %v165 = vmul.f32 %v164, %v97
    %v166 = vmul.f32 %v165, %v165
    %167 = vadd.xlane.f32.xlu0 %v166
    %v168 = vpop.xlane.xlu0 %167
    %v169 = vmul.f32 %v168, 0.03125
    %v170 = vadd.f32 %v169, 1e-05
    %v171 = vrsqrt.pop %v170
    %v172 = vmul.f32 %v165, %v171
    %v174 = vlaneseq
    %v175 = vshrl.u32 %v174, 7
    %v176 = vsub.s32 0, %v175
    %v177 = vrot.slane %v159, %v176
    %v179 = vmul.f32 %v172, %v177
    %v181 = vlaneseq
    %v182 = vshrl.u32 %v181, 7
    %v183 = vsub.s32 0, %v182
    %v184 = vrot.slane %v160, %v183
    %v186 = vadd.f32 %v179, %v184
    %v187 = vmax.f32 %v186, 0.0
    %v188 = vpack.c.bf16 %v187, %v187
    %v189 = vld [vmem:[#allocation7] sm:$0xf]
    %v190 = vld [vmem:[#allocation7 + $0x4] sm:$0xf]
    %v191 = vld [vmem:[#allocation7 + $0x8] sm:$0xf]
    %v192 = vld [vmem:[#allocation7 + $0xc] sm:$0xf]
    %v193 = vld [vmem:[#allocation7 + $0x10] sm:$0xf]
    %v194 = vld [vmem:[#allocation7 + $0x14] sm:$0xf]
    %v195 = vld [vmem:[#allocation7 + $0x18] sm:$0xf]
    %v196 = vld [vmem:[#allocation7 + $0x1c] sm:$0xf]
    %v197 = vld [vmem:[#allocation7 + $0x20] sm:$0xf]
    %v198 = vld [vmem:[#allocation7 + $0x24] sm:$0xf]
    %v199 = vld [vmem:[#allocation7 + $0x28] sm:$0xf]
    %v200 = vld [vmem:[#allocation7 + $0x2c] sm:$0xf]
    %v201 = vld [vmem:[#allocation7 + $0x30] sm:$0xf]
    %v202 = vld [vmem:[#allocation7 + $0x34] sm:$0xf]
    %v203 = vld [vmem:[#allocation7 + $0x38] sm:$0xf]
    %v204 = vld [vmem:[#allocation7 + $0x3c] sm:$0xf]
    %v205 = vld [vmem:[%s6] sm:$0x1]
    %v207 = vlaneseq
    %v208 = vshrl.u32 %v207, 7
    %v209 = vsub.s32 0, %v208
    %v210 = vrot.slane %v205, %v209
    %v228 = vunpack.c.l.b16 %v189
    %v229 = vunpack.c.l.b16 %v190
    %v230 = vunpack.c.l.b16 %v191
    %v231 = vunpack.c.l.b16 %v192
    %v232 = vunpack.c.l.b16 %v193
    %v233 = vunpack.c.l.b16 %v194
    %v234 = vunpack.c.l.b16 %v195
    %v235 = vunpack.c.l.b16 %v196
    %v236 = vunpack.c.l.b16 %v197
    %v237 = vunpack.c.l.b16 %v198
    %v238 = vunpack.c.l.b16 %v199
    %v239 = vunpack.c.l.b16 %v200
    %v240 = vunpack.c.l.b16 %v201
    %v241 = vunpack.c.l.b16 %v202
    %v242 = vunpack.c.l.b16 %v203
    %v243 = vunpack.c.l.b16 %v204
    %v244 = vpack.c.b16 %v229, %v228
    %v245 = vpack.c.b16 %v231, %v230
    %v246 = vpack.c.b16 %v233, %v232
    %v247 = vpack.c.b16 %v235, %v234
    %v248 = vpack.c.b16 %v237, %v236
    %v249 = vpack.c.b16 %v239, %v238
    %v250 = vpack.c.b16 %v241, %v240
    %v251 = vpack.c.b16 %v243, %v242
    %260 = vmatprep.subr.bf16.mxu0 0
    %261 = vmatpush1.bf16.msra.mxu0 %v251
    %262 = vmatprep.subr.bf16.mxu0 0
    %263 = vmatpush1.bf16.msra.mxu0 %v250
    %264 = vmatprep.subr.bf16.mxu0 0
    %265 = vmatpush1.bf16.msra.mxu0 %v249
    %266 = vmatprep.subr.bf16.mxu0 0
    %267 = vmatpush1.bf16.msra.mxu0 %v248
    %268 = vmatprep.subr.bf16.mxu0 0
    %269 = vmatpush1.bf16.msra.mxu0 %v247
    %270 = vmatprep.subr.bf16.mxu0 0
    %271 = vmatpush1.bf16.msra.mxu0 %v246
    %272 = vmatprep.subr.bf16.mxu0 0
    %273 = vmatpush1.bf16.msra.mxu0 %v245
    %274 = vmatprep.subr.bf16.mxu0 0
    %275 = vmatpush1.bf16.msra.mxu0 %v244
    %276 = vmatprep.subr.bf16.mxu0 0
    %277 = vmatpush2.bf16.msra.mxu0 0
    %278 = vmatprep.subr.bf16.mxu0 0
    %279 = vmatpush2.bf16.msra.mxu0 0
    %280 = vmatprep.subr.bf16.mxu0 0
    %281 = vmatpush2.bf16.msra.mxu0 0
    %282 = vmatprep.subr.bf16.mxu0 0
    %283 = vmatpush2.bf16.msra.mxu0 0
    %284 = vmatprep.subr.bf16.mxu0 0
    %285 = vmatpush2.bf16.msra.mxu0 0
    %286 = vmatprep.subr.bf16.mxu0 0
    %287 = vmatpush2.bf16.msra.mxu0 0
    %288 = vmatprep.subr.bf16.mxu0 0
    %289 = vmatpush2.bf16.msra.mxu0 0
    %290 = vmatprep.subr.bf16.mxu0 0
    %291 = vmatpush2.bf16.msra.mxu0 0
    %292 = vmatprep.mubr.bf16.mxu0 0
    %293 = vmatmul.mubr.bf16.gmra.mxu0 %v188
    %v294 = vpop.f32.mrf.mxu0
    %v295 = vadd.f32 %v210, %v294
    %v296 = vpop.f32.mrf.mxu0
    %v297 = vpop.f32.mrf.mxu0
    %v298 = vpop.f32.mrf.mxu0
    %299 = vdwg.mxu0
    %v300 = vld [vmem:[%s7] sm:$0x1]
    %v301 = vld [vmem:[%s8] sm:$0x1]
    %302 = vadd.xlane.f32.xlu0 %v295
    %v303 = vpop.xlane.xlu0 %302
    %v304 = vmul.f32 %v303, 0.03125
    %v305 = vsub.f32 %v295, %v304
    %v306 = vmul.f32 %v305, %v97
    %v307 = vmul.f32 %v306, %v306
    %308 = vadd.xlane.f32.xlu0 %v307
    %v309 = vpop.xlane.xlu0 %308
    %v310 = vmul.f32 %v309, 0.03125
    %v311 = vadd.f32 %v310, 1e-05
    %v312 = vrsqrt.pop %v311
    %v313 = vmul.f32 %v306, %v312
    %v315 = vlaneseq
    %v316 = vshrl.u32 %v315, 7
    %v317 = vsub.s32 0, %v316
    %v318 = vrot.slane %v300, %v317
    %v320 = vmul.f32 %v313, %v318
    %v322 = vlaneseq
    %v323 = vshrl.u32 %v322, 7
    %v324 = vsub.s32 0, %v323
    %v325 = vrot.slane %v301, %v324
    %v327 = vadd.f32 %v320, %v325
    %v328 = vmax.f32 %v327, 0.0
    %v329 = vpack.c.bf16 %v328, %v328
    %v330 = vld [vmem:[#allocation8] sm:$0xf]
    %v331 = vld [vmem:[#allocation8 + $0x4] sm:$0xf]
    %v332 = vld [vmem:[#allocation8 + $0x8] sm:$0xf]
    %v333 = vld [vmem:[#allocation8 + $0xc] sm:$0xf]
    %v334 = vld [vmem:[#allocation8 + $0x10] sm:$0xf]
    %v335 = vld [vmem:[#allocation8 + $0x14] sm:$0xf]
    %v336 = vld [vmem:[#allocation8 + $0x18] sm:$0xf]
    %v337 = vld [vmem:[#allocation8 + $0x1c] sm:$0xf]
    %v338 = vld [vmem:[#allocation8 + $0x20] sm:$0xf]
    %v339 = vld [vmem:[#allocation8 + $0x24] sm:$0xf]
    %v340 = vld [vmem:[#allocation8 + $0x28] sm:$0xf]
    %v341 = vld [vmem:[#allocation8 + $0x2c] sm:$0xf]
    %v342 = vld [vmem:[#allocation8 + $0x30] sm:$0xf]
    %v343 = vld [vmem:[#allocation8 + $0x34] sm:$0xf]
    %v344 = vld [vmem:[#allocation8 + $0x38] sm:$0xf]
    %v345 = vld [vmem:[#allocation8 + $0x3c] sm:$0xf]
    %v346 = vld [vmem:[%s10] sm:$0x1]
    %v348 = vlaneseq
    %v349 = vshrl.u32 %v348, 7
    %v350 = vsub.s32 0, %v349
    %v351 = vrot.slane %v346, %v350
    %v369 = vunpack.c.l.b16 %v330
    %v370 = vunpack.c.l.b16 %v331
    %v371 = vunpack.c.l.b16 %v332
    %v372 = vunpack.c.l.b16 %v333
    %v373 = vunpack.c.l.b16 %v334
    %v374 = vunpack.c.l.b16 %v335
    %v375 = vunpack.c.l.b16 %v336
    %v376 = vunpack.c.l.b16 %v337
    %v377 = vunpack.c.l.b16 %v338
    %v378 = vunpack.c.l.b16 %v339
    %v379 = vunpack.c.l.b16 %v340
    %v380 = vunpack.c.l.b16 %v341
    %v381 = vunpack.c.l.b16 %v342
    %v382 = vunpack.c.l.b16 %v343
    %v383 = vunpack.c.l.b16 %v344
    %v384 = vunpack.c.l.b16 %v345
    %v385 = vpack.c.b16 %v370, %v369
    %v386 = vpack.c.b16 %v372, %v371
    %v387 = vpack.c.b16 %v374, %v373
    %v388 = vpack.c.b16 %v376, %v375
    %v389 = vpack.c.b16 %v378, %v377
    %v390 = vpack.c.b16 %v380, %v379
    %v391 = vpack.c.b16 %v382, %v381
    %v392 = vpack.c.b16 %v384, %v383
    %401 = vmatprep.subr.bf16.mxu0 0
    %402 = vmatpush1.bf16.msra.mxu0 %v392
    %403 = vmatprep.subr.bf16.mxu0 0
    %404 = vmatpush1.bf16.msra.mxu0 %v391
    %405 = vmatprep.subr.bf16.mxu0 0
    %406 = vmatpush1.bf16.msra.mxu0 %v390
    %407 = vmatprep.subr.bf16.mxu0 0
    %408 = vmatpush1.bf16.msra.mxu0 %v389
    %409 = vmatprep.subr.bf16.mxu0 0
    %410 = vmatpush1.bf16.msra.mxu0 %v388
    %411 = vmatprep.subr.bf16.mxu0 0
    %412 = vmatpush1.bf16.msra.mxu0 %v387
    %413 = vmatprep.subr.bf16.mxu0 0
    %414 = vmatpush1.bf16.msra.mxu0 %v386
    %415 = vmatprep.subr.bf16.mxu0 0
    %416 = vmatpush1.bf16.msra.mxu0 %v385
    %417 = vmatprep.subr.bf16.mxu0 0
    %418 = vmatpush2.bf16.msra.mxu0 0
    %419 = vmatprep.subr.bf16.mxu0 0
    %420 = vmatpush2.bf16.msra.mxu0 0
    %421 = vmatprep.subr.bf16.mxu0 0
    %422 = vmatpush2.bf16.msra.mxu0 0
    %423 = vmatprep.subr.bf16.mxu0 0
    %424 = vmatpush2.bf16.msra.mxu0 0
    %425 = vmatprep.subr.bf16.mxu0 0
    %426 = vmatpush2.bf16.msra.mxu0 0
    %427 = vmatprep.subr.bf16.mxu0 0
    %428 = vmatpush2.bf16.msra.mxu0 0
    %429 = vmatprep.subr.bf16.mxu0 0
    %430 = vmatpush2.bf16.msra.mxu0 0
    %431 = vmatprep.subr.bf16.mxu0 0
    %432 = vmatpush2.bf16.msra.mxu0 0
    %433 = vmatprep.mubr.bf16.mxu0 0
    %434 = vmatmul.mubr.bf16.gmra.mxu0 %v329
    %v435 = vpop.f32.mrf.mxu0
    %v436 = vadd.f32 %v351, %v435
    %v437 = vpop.f32.mrf.mxu0
    %v438 = vpop.f32.mrf.mxu0
    %v439 = vpop.f32.mrf.mxu0
    %440 = vdwg.mxu0
    %v441 = vtanh.pop %v436
    %442 = vst [vmem:[#allocation10] sm:$0xff] %v441
    // Predicated region
    $region62: #{tpu_custom_call.1} parent=1 // pred_check
      _
    $region63: #{tpu_custom_call.1} parent=1 // pred_check_branch
      %444 = sbr.rel (0) target = $region65
    $region64: #{tpu_custom_call.1} parent=1 // pred_region
      %s446 = ssub.s32 128, 128
      %447 = vsyncadd [#allocation4], %s446
      %s449 = sshll.u32 [#allocation10], 4
      %s450 = int_to_ptr.vmem [resolvable:$true] %s449
      %452 = dma.vmem_to_hbm [thread:$0]  %s450, 128, %s11, [#allocation4]
    $region65: #{tpu_custom_call.1} parent=1 // pred_fallthru
      _
    // Predicated region
    $region66: #{tpu_custom_call.1} parent=1 // pred_check
      _
    $region67: #{tpu_custom_call.1} parent=1 // pred_check_branch
      %454 = sbr.rel (0) target = $region69
    $region68: #{tpu_custom_call.1} parent=1 // pred_region
      %455 = dma.done [#allocation4], 128
    $region69: #{tpu_custom_call.1} parent=1 // pred_fallthru
      _
    %456 = vsyncpa [#allocation3], 1
    %457 = vsyncpa [#allocation6], 1
    %458 = vsyncpa [#allocation9], 1
    %459 = vsyncpa [#allocation4], 1

</llo_original>
